<compile_context>
chip_gen: v7x
topology: tpu7x:2x2x1
jax: 0.10.0
libtpu: 0.0.40
codegen_flags: <defaults>
</compile_context>

<pallas_src>
import jax
import jax.numpy as jnp
from jax import lax
from jax.experimental import pallas as pl
from jax.experimental.pallas import tpu as pltpu

EPS = 1e-5  # nn.LayerNorm default


def _layernorm(z, g, b):
    mean = jnp.mean(z, axis=-1, keepdims=True)
    zc = z - mean
    var = jnp.mean(zc * zc, axis=-1, keepdims=True)
    return zc * lax.rsqrt(var + EPS) * g + b


# ----------------------------------------------------------------------------
# Fused encoder kernel: one grid step = (batch block bb, layer l)
# ----------------------------------------------------------------------------
def _make_encoder_kernel(*, nhead, head_dim, seq_len, batch_block,
                         final_norm, has_pos, compute_dtype):
    d_model = nhead * head_dim
    cdt = compute_dtype
    scale = 1.0 / (head_dim ** 0.5)

    def kernel(*refs):
        idx = 0
        src_ref = refs[idx]; idx += 1
        if has_pos:
            pos_ref = refs[idx]; idx += 1
        else:
            pos_ref = None
        (wq_ref, wk_ref, wv_ref, wo_ref,
         bq_ref, bk_ref, bv_ref, bo_ref,
         g1_ref, be1_ref, g2_ref, be2_ref,
         w1_ref, bf1_ref, w2_ref, bf2_ref) = refs[idx:idx + 16]
        idx += 16
        if final_norm:
            gf_ref, bff_ref = refs[idx:idx + 2]
            idx += 2
        else:
            gf_ref = bff_ref = None
        out_ref = refs[idx]; idx += 1
        x_acc, qkv_ref, ctx_ref = refs[idx:idx + 3]

        layer = pl.program_id(1)

        # Layer 0 of each batch block: load the (M, D) activation into the resident
        # f32 accumulator. It stays in VMEM across the whole layer stack.
        @pl.when(layer == 0)
        def _():
            x_acc[...] = src_ref[...].astype(jnp.float32)

        x = x_acc[...]                                    # (M, D) f32, M = Bblk*S
        if has_pos:
            qk_in = x + pos_ref[...].astype(jnp.float32)  # q = k = src + pos
        else:
            qk_in = x

        qk_c = qk_in.astype(cdt)
        x_c = x.astype(cdt)

        # --- lane-dense Q/K/V projections over all heads (bf16 in, f32 accumulate)
        q = jnp.dot(qk_c, wq_ref[0], preferred_element_type=jnp.float32) + bq_ref[0]
        k = jnp.dot(qk_c, wk_ref[0], preferred_element_type=jnp.float32) + bk_ref[0]
        v = jnp.dot(x_c, wv_ref[0], preferred_element_type=jnp.float32) + bv_ref[0]
        qkv_ref[0] = q.astype(cdt)
        qkv_ref[1] = k.astype(cdt)
        qkv_ref[2] = v.astype(cdt)

        # --- per-batch-element multi-head attention.
        #     fori_loop bounds the live range of the (S, S) temporaries per batch
        #     element; head slices are static lane slices of the lane-dense scratch.
        def attend_one_batch(b, carry):
            r0 = b * seq_len
            for h in range(nhead):                        # static unroll: lane slices static
                c0 = h * head_dim
                qh = qkv_ref[0, pl.ds(r0, seq_len), pl.ds(c0, head_dim)]
                kh = qkv_ref[1, pl.ds(r0, seq_len), pl.ds(c0, head_dim)]
                vh = qkv_ref[2, pl.ds(r0, seq_len), pl.ds(c0, head_dim)]
                # scores = qh @ kh^T (contract head dim of both; no materialized T)
                s = lax.dot_general(qh, kh, (((1,), (1,)), ((), ())),
                                    preferred_element_type=jnp.float32) * scale
                s = s - jnp.max(s, axis=-1, keepdims=True)
                p = jnp.exp(s)
                p = p * pl.reciprocal(jnp.sum(p, axis=-1, keepdims=True), approx=True)
                ctx_h = jnp.dot(p.astype(cdt), vh,
                                preferred_element_type=jnp.float32)   # (S, hd) f32
                # write into lane-dense context scratch -> single Wo matmul afterwards
                ctx_ref[pl.ds(r0, seq_len), pl.ds(c0, head_dim)] = ctx_h.astype(cdt)
            return carry

        lax.fori_loop(0, batch_block, attend_one_batch, 0)

        # --- single lane-dense output projection over all heads
        attn_out = jnp.dot(ctx_ref[...], wo_ref[0],
                           preferred_element_type=jnp.float32) + bo_ref[0]

        # --- add & LayerNorm 1 (f32 elementwise)
        x = _layernorm(x + attn_out, g1_ref[0], be1_ref[0])

        # --- feed-forward: linear2(relu(linear1(x)))
        h1 = jnp.maximum(
            jnp.dot(x.astype(cdt), w1_ref[0],
                    preferred_element_type=jnp.float32) + bf1_ref[0], 0.0)
        ff = jnp.dot(h1.astype(cdt), w2_ref[0],
                     preferred_element_type=jnp.float32) + bf2_ref[0]

        # --- add & LayerNorm 2
        x = _layernorm(x + ff, g2_ref[0], be2_ref[0])
        x_acc[...] = x

        # Last layer: optional final norm, then the single HBM writeback.
        @pl.when(layer == pl.num_programs(1) - 1)
        def _():
            y = x
            if final_norm:
                y = _layernorm(y, gf_ref[...], bff_ref[...])
            out_ref[...] = y.astype(out_ref.dtype)

    return kernel


# ----------------------------------------------------------------------------
# Wrapper: PyTorch seq-first (S, B, D) in / out
# ----------------------------------------------------------------------------
def transformer_encoder_forward(src, params, nhead, pos=None, batch_block=None,
                                compute_dtype=jnp.bfloat16):
    S, B, D = src.shape
    assert D % nhead == 0
    head_dim = D // nhead
    num_layers = params["wq"].shape[0]
    dim_ff = params["w1"].shape[-1]
    final_norm = "norm_g" in params
    has_pos = pos is not None

    if batch_block is None:
        # >=2 parallel grid steps when possible (feeds both TCs on v7x) while still
        # amortizing per-layer weight DMA across a whole batch block.
        batch_block = B // 2 if (B % 2 == 0 and B >= 2) else 1
    assert B % batch_block == 0
    # Keep the row-block second-minor dim legal: multiple of 8 or the full extent.
    if (batch_block * S) % 8 != 0 and batch_block != B:
        batch_block = B
    n_bblk = B // batch_block
    M = batch_block * S

    # (S, B, D) -> lane-dense (B*S, D) rows (contiguous per batch element).
    src_f = jnp.transpose(src, (1, 0, 2)).reshape(B * S, D)

    row_spec = pl.BlockSpec((M, D), lambda bb, l: (bb, 0))
    per_layer = lambda bb, l: (l, 0, 0)
    shared2 = lambda bb, l: (0, 0)

    cdt = compute_dtype
    wcast = lambda w: w.astype(cdt)

    args = [src_f]
    in_specs = [row_spec]
    if has_pos:
        pos_f = jnp.transpose(pos, (1, 0, 2)).reshape(B * S, D)
        args.append(pos_f)
        in_specs.append(row_spec)

    weight_args = [
        (wcast(params["wq"]), (1, D, D)),
        (wcast(params["wk"]), (1, D, D)),
        (wcast(params["wv"]), (1, D, D)),
        (wcast(params["wo"]), (1, D, D)),
        (params["bq"], (1, 1, D)),
        (params["bk"], (1, 1, D)),
        (params["bv"], (1, 1, D)),
        (params["bo"], (1, 1, D)),
        (params["ln1_g"], (1, 1, D)),
        (params["ln1_b"], (1, 1, D)),
        (params["ln2_g"], (1, 1, D)),
        (params["ln2_b"], (1, 1, D)),
        (wcast(params["w1"]), (1, D, dim_ff)),
        (params["b1"], (1, 1, dim_ff)),
        (wcast(params["w2"]), (1, dim_ff, D)),
        (params["b2"], (1, 1, D)),
    ]
    for arr, blk in weight_args:
        args.append(arr)
        in_specs.append(pl.BlockSpec(blk, per_layer))
    if final_norm:
        args += [params["norm_g"], params["norm_b"]]
        in_specs += [pl.BlockSpec((1, D), shared2), pl.BlockSpec((1, D), shared2)]

    kernel = _make_encoder_kernel(nhead=nhead, head_dim=head_dim, seq_len=S,
                                  batch_block=batch_block, final_norm=final_norm,
                                  has_pos=has_pos, compute_dtype=cdt)

    out_f = pl.pallas_call(
        kernel,
        out_shape=jax.ShapeDtypeStruct((B * S, D), src.dtype),
        grid=(n_bblk, num_layers),
        in_specs=in_specs,
        out_specs=row_spec,
        scratch_shapes=[
            pltpu.VMEM((M, D), jnp.float32),   # running activation, resident across layers
            pltpu.VMEM((3, M, D), cdt),        # Q / K / V for the current layer
            pltpu.VMEM((M, D), cdt),           # lane-dense per-head context
        ],
        compiler_params=pltpu.CompilerParams(
            dimension_semantics=("parallel", "arbitrary"),
            # TODO(synk): re-derive batch tile / VMEM limit at production (DETR) shapes,
            # especially on v7x (64 MiB VMEM).
            vmem_limit_bytes=32 * 1024 * 1024,
        ),
    )(*args)
    return jnp.transpose(out_f.reshape(B, S, D), (1, 0, 2))   # back to (S, B, D)


# ----------------------------------------------------------------------------
# Pure-JAX reference (f32 math) for verification
# ----------------------------------------------------------------------------
def reference_forward(src, params, nhead, pos=None):
    S, B, D = src.shape
    hd = D // nhead
    num_layers = params["wq"].shape[0]

    x = jnp.transpose(src, (1, 0, 2))                          # (B, S, D)
    pos_b = None if pos is None else jnp.transpose(pos, (1, 0, 2))

    def heads(t):
        return t.reshape(B, S, nhead, hd).transpose(0, 2, 1, 3)

    for li in range(num_layers):
        qk = x if pos_b is None else x + pos_b
        q = qk @ params["wq"][li] + params["bq"][li]
        k = qk @ params["wk"][li] + params["bk"][li]
        v = x @ params["wv"][li] + params["bv"][li]
        qh, kh, vh = heads(q), heads(k), heads(v)
        s = jnp.einsum("bhqd,bhkd->bhqk", qh, kh) / jnp.sqrt(jnp.float32(hd))
        a = jax.nn.softmax(s, axis=-1)
        ctx = jnp.einsum("bhqk,bhkd->bhqd", a, vh)
        ctx = ctx.transpose(0, 2, 1, 3).reshape(B, S, D)
        attn = ctx @ params["wo"][li] + params["bo"][li]
        x = _layernorm(x + attn, params["ln1_g"][li], params["ln1_b"][li])
        h1 = jnp.maximum(x @ params["w1"][li] + params["b1"][li], 0.0)
        ff = h1 @ params["w2"][li] + params["b2"][li]
        x = _layernorm(x + ff, params["ln2_g"][li], params["ln2_b"][li])

    if "norm_g" in params:
        x = _layernorm(x, params["norm_g"], params["norm_b"])
    return jnp.transpose(x, (1, 0, 2))


# ----------------------------------------------------------------------------
# Deterministic parameter init (lane-dense weight layout)
# ----------------------------------------------------------------------------
def init_params(key, num_layers, d_model, nhead, dim_ff, with_final_norm=True):
    del nhead  # weights are lane-dense (D, D); heads are split by the attention code

    def mat(k, shape, scale=0.1):
        return (scale * jax.random.normal(k, shape)).astype(jnp.float32)

    ks = jax.random.split(key, 18)
    p = dict(
        wq=mat(ks[0], (num_layers, d_model, d_model)),
        wk=mat(ks[1], (num_layers, d_model, d_model)),
        wv=mat(ks[2], (num_layers, d_model, d_model)),
        wo=mat(ks[3], (num_layers, d_model, d_model)),
        bq=mat(ks[4], (num_layers, 1, d_model)),
        bk=mat(ks[5], (num_layers, 1, d_model)),
        bv=mat(ks[6], (num_layers, 1, d_model)),
        bo=mat(ks[7], (num_layers, 1, d_model)),
        w1=mat(ks[8], (num_layers, d_model, dim_ff)),
        b1=mat(ks[9], (num_layers, 1, dim_ff)),
        w2=mat(ks[10], (num_layers, dim_ff, d_model)),
        b2=mat(ks[11], (num_layers, 1, d_model)),
        ln1_g=1.0 + mat(ks[12], (num_layers, 1, d_model)),
        ln1_b=mat(ks[13], (num_layers, 1, d_model)),
        ln2_g=1.0 + mat(ks[14], (num_layers, 1, d_model)),
        ln2_b=mat(ks[15], (num_layers, 1, d_model)),
    )
    if with_final_norm:
        p["norm_g"] = 1.0 + mat(ks[16], (1, d_model))
        p["norm_b"] = mat(ks[17], (1, d_model))
    return p


if __name__ == "__main__":
    S, B = 8, 2
    d_model, nhead, dim_ff, num_layers = 32, 4, 64, 2

    key = jax.random.PRNGKey(0)
    k_inp, k_par = jax.random.split(key)
    k_src, k_pos = jax.random.split(k_inp)
    src = jax.random.normal(k_src, (S, B, d_model), jnp.float32)
    pos = jax.random.normal(k_pos, (S, B, d_model), jnp.float32)

    params = init_params(k_par, num_layers, d_model, nhead, dim_ff,
                         with_final_norm=True)

    out = transformer_encoder_forward(src, params, nhead=nhead, pos=pos)
    out = jax.block_until_ready(out)
    assert out.shape == (S, B, d_model)

    # Reference uses the same bf16-rounded matmul weights the kernel sees, but f32 math.
    # Remaining divergence: bf16 activation rounding at MXU inputs + approximate (EUP)
    # softmax reciprocal -> loosened tolerance (inference-grade bf16 path).
    ref_params = dict(params)
    for name in ("wq", "wk", "wv", "wo", "w1", "w2"):
        ref_params[name] = params[name].astype(jnp.bfloat16).astype(jnp.float32)
    ref = reference_forward(src, ref_params, nhead=nhead, pos=pos)

    max_err = float(jnp.max(jnp.abs(out - ref)))
    assert jnp.allclose(out, ref, atol=5e-2, rtol=5e-2), max_err

    print("KERNEL_OK")
</pallas_src>

<mosaic_0001>
module attributes {stable_mosaic.version = 11 : i64} {
  func.func @kernel(%arg0: i32, %arg1: i32, %arg2: memref<8x32xf32, #tpu.memory_space<vmem>>, %arg3: memref<8x32xf32, #tpu.memory_space<vmem>>, %arg4: memref<1x32x32xbf16, #tpu.memory_space<vmem>>, %arg5: memref<1x32x32xbf16, #tpu.memory_space<vmem>>, %arg6: memref<1x32x32xbf16, #tpu.memory_space<vmem>>, %arg7: memref<1x32x32xbf16, #tpu.memory_space<vmem>>, %arg8: memref<1x1x32xf32, #tpu.memory_space<vmem>>, %arg9: memref<1x1x32xf32, #tpu.memory_space<vmem>>, %arg10: memref<1x1x32xf32, #tpu.memory_space<vmem>>, %arg11: memref<1x1x32xf32, #tpu.memory_space<vmem>>, %arg12: memref<1x1x32xf32, #tpu.memory_space<vmem>>, %arg13: memref<1x1x32xf32, #tpu.memory_space<vmem>>, %arg14: memref<1x1x32xf32, #tpu.memory_space<vmem>>, %arg15: memref<1x1x32xf32, #tpu.memory_space<vmem>>, %arg16: memref<1x32x64xbf16, #tpu.memory_space<vmem>>, %arg17: memref<1x1x64xf32, #tpu.memory_space<vmem>>, %arg18: memref<1x64x32xbf16, #tpu.memory_space<vmem>>, %arg19: memref<1x1x32xf32, #tpu.memory_space<vmem>>, %arg20: memref<1x32xf32, #tpu.memory_space<vmem>>, %arg21: memref<1x32xf32, #tpu.memory_space<vmem>>, %arg22: memref<8x32xf32, #tpu.memory_space<vmem>>, %arg23: memref<8x32xf32, #tpu.memory_space<vmem>>, %arg24: memref<3x8x32xbf16, #tpu.memory_space<vmem>>, %arg25: memref<8x32xbf16, #tpu.memory_space<vmem>>) attributes {dimension_semantics = [#tpu.dimension_semantics<parallel>, #tpu.dimension_semantics<arbitrary>], iteration_bounds = array<i64: 2, 2>, scalar_prefetch = 0 : i64, scratch_operands = 3 : i64, tpu.core_type = #tpu.core_type<tc>, window_params = [{transform_indices = @transform_0, window_bounds = array<i64: 8, 32>}, {transform_indices = @transform_1, window_bounds = array<i64: 8, 32>}, {transform_indices = @transform_2, window_bounds = array<i64: 1, 32, 32>}, {transform_indices = @transform_3, window_bounds = array<i64: 1, 32, 32>}, {transform_indices = @transform_4, window_bounds = array<i64: 1, 32, 32>}, {transform_indices = @transform_5, window_bounds = array<i64: 1, 32, 32>}, {transform_indices = @transform_6, window_bounds = array<i64: 1, 1, 32>}, {transform_indices = @transform_7, window_bounds = array<i64: 1, 1, 32>}, {transform_indices = @transform_8, window_bounds = array<i64: 1, 1, 32>}, {transform_indices = @transform_9, window_bounds = array<i64: 1, 1, 32>}, {transform_indices = @transform_10, window_bounds = array<i64: 1, 1, 32>}, {transform_indices = @transform_11, window_bounds = array<i64: 1, 1, 32>}, {transform_indices = @transform_12, window_bounds = array<i64: 1, 1, 32>}, {transform_indices = @transform_13, window_bounds = array<i64: 1, 1, 32>}, {transform_indices = @transform_14, window_bounds = array<i64: 1, 32, 64>}, {transform_indices = @transform_15, window_bounds = array<i64: 1, 1, 64>}, {transform_indices = @transform_16, window_bounds = array<i64: 1, 64, 32>}, {transform_indices = @transform_17, window_bounds = array<i64: 1, 1, 32>}, {pipeline_mode = #tpu.pipeline_mode<synchronous>, transform_indices = @transform_18, window_bounds = array<i64: 1, 32>}, {pipeline_mode = #tpu.pipeline_mode<synchronous>, transform_indices = @transform_19, window_bounds = array<i64: 1, 32>}, {transform_indices = @transform_20, window_bounds = array<i64: 8, 32>}]} {
    %c0_i32 = arith.constant 0 : i32
    %0 = arith.cmpi eq, %arg1, %c0_i32 : i32
    %1 = arith.extui %0 : i1 to i32
    %c0_i32_0 = arith.constant 0 : i32
    %2 = arith.cmpi ne, %1, %c0_i32_0 : i32
    scf.if %2 {
      %c0_127 = arith.constant 0 : index
      %c0_128 = arith.constant 0 : index
      %230 = vector.load %arg2[%c0_127, %c0_128] : memref<8x32xf32, #tpu.memory_space<vmem>>, vector<8x32xf32>
      %c0_129 = arith.constant 0 : index
      %c0_130 = arith.constant 0 : index
      %231 = vector.load %arg23[%c0_129, %c0_130] : memref<8x32xf32, #tpu.memory_space<vmem>>, vector<8x32xf32>
      tpu.vector_store %arg23[%c0_129, %c0_130], %230 {strides = array<i32>} : memref<8x32xf32, #tpu.memory_space<vmem>>, vector<8x32xf32>,
    } else {
    }
    %c0 = arith.constant 0 : index
    %c0_1 = arith.constant 0 : index
    %3 = vector.load %arg23[%c0, %c0_1] : memref<8x32xf32, #tpu.memory_space<vmem>>, vector<8x32xf32>
    %c0_2 = arith.constant 0 : index
    %c0_3 = arith.constant 0 : index
    %4 = vector.load %arg3[%c0_2, %c0_3] : memref<8x32xf32, #tpu.memory_space<vmem>>, vector<8x32xf32>
    %5 = arith.addf %3, %4 : vector<8x32xf32>
    %6 = arith.truncf %5 : vector<8x32xf32> to vector<8x32xbf16>
    %7 = arith.truncf %3 : vector<8x32xf32> to vector<8x32xbf16>
    %c0_4 = arith.constant 0 : index
    %c0_5 = arith.constant 0 : index
    %c0_6 = arith.constant 0 : index
    %8 = vector.load %arg4[%c0_4, %c0_5, %c0_6] : memref<1x32x32xbf16, #tpu.memory_space<vmem>>, vector<1x32x32xbf16>
    %9 = vector.shape_cast %8 : vector<1x32x32xbf16> to vector<32x32xbf16>
    %cst = arith.constant dense<0.000000e+00> : vector<8x32xf32>
    %10 = tpu.matmul %6, %9, %cst {dimension_numbers = #tpu.dot_dimension_numbers<[1], [0], [0], [1], [0, 0, 1, 1], [], []>} : vector<8x32xbf16>, vector<32x32xbf16>, vector<8x32xf32> -> vector<8x32xf32>
    %c0_7 = arith.constant 0 : index
    %c0_8 = arith.constant 0 : index
    %c0_9 = arith.constant 0 : index
    %11 = vector.load %arg8[%c0_7, %c0_8, %c0_9] : memref<1x1x32xf32, #tpu.memory_space<vmem>>, vector<1x1x32xf32>
    %12 = vector.shape_cast %11 : vector<1x1x32xf32> to vector<1x32xf32>
    %13 = vector.broadcast %12 : vector<1x32xf32> to vector<8x32xf32>
    %14 = arith.addf %10, %13 : vector<8x32xf32>
    %c0_10 = arith.constant 0 : index
    %c0_11 = arith.constant 0 : index
    %c0_12 = arith.constant 0 : index
    %15 = vector.load %arg5[%c0_10, %c0_11, %c0_12] : memref<1x32x32xbf16, #tpu.memory_space<vmem>>, vector<1x32x32xbf16>
    %16 = vector.shape_cast %15 : vector<1x32x32xbf16> to vector<32x32xbf16>
    %cst_13 = arith.constant dense<0.000000e+00> : vector<8x32xf32>
    %17 = tpu.matmul %6, %16, %cst_13 {dimension_numbers = #tpu.dot_dimension_numbers<[1], [0], [0], [1], [0, 0, 1, 1], [], []>} : vector<8x32xbf16>, vector<32x32xbf16>, vector<8x32xf32> -> vector<8x32xf32>
    %c0_14 = arith.constant 0 : index
    %c0_15 = arith.constant 0 : index
    %c0_16 = arith.constant 0 : index
    %18 = vector.load %arg9[%c0_14, %c0_15, %c0_16] : memref<1x1x32xf32, #tpu.memory_space<vmem>>, vector<1x1x32xf32>
    %19 = vector.shape_cast %18 : vector<1x1x32xf32> to vector<1x32xf32>
    %20 = vector.broadcast %19 : vector<1x32xf32> to vector<8x32xf32>
    %21 = arith.addf %17, %20 : vector<8x32xf32>
    %c0_17 = arith.constant 0 : index
    %c0_18 = arith.constant 0 : index
    %c0_19 = arith.constant 0 : index
    %22 = vector.load %arg6[%c0_17, %c0_18, %c0_19] : memref<1x32x32xbf16, #tpu.memory_space<vmem>>, vector<1x32x32xbf16>
    %23 = vector.shape_cast %22 : vector<1x32x32xbf16> to vector<32x32xbf16>
    %cst_20 = arith.constant dense<0.000000e+00> : vector<8x32xf32>
    %24 = tpu.matmul %7, %23, %cst_20 {dimension_numbers = #tpu.dot_dimension_numbers<[1], [0], [0], [1], [0, 0, 1, 1], [], []>} : vector<8x32xbf16>, vector<32x32xbf16>, vector<8x32xf32> -> vector<8x32xf32>
    %c0_21 = arith.constant 0 : index
    %c0_22 = arith.constant 0 : index
    %c0_23 = arith.constant 0 : index
    %25 = vector.load %arg10[%c0_21, %c0_22, %c0_23] : memref<1x1x32xf32, #tpu.memory_space<vmem>>, vector<1x1x32xf32>
    %26 = vector.shape_cast %25 : vector<1x1x32xf32> to vector<1x32xf32>
    %27 = vector.broadcast %26 : vector<1x32xf32> to vector<8x32xf32>
    %28 = arith.addf %24, %27 : vector<8x32xf32>
    %29 = arith.truncf %14 : vector<8x32xf32> to vector<8x32xbf16>
    %c0_24 = arith.constant 0 : index
    %c0_25 = arith.constant 0 : index
    %c0_26 = arith.constant 0 : index
    %30 = vector.load %arg24[%c0_24, %c0_25, %c0_26] : memref<3x8x32xbf16, #tpu.memory_space<vmem>>, vector<1x8x32xbf16>
    %31 = vector.shape_cast %30 : vector<1x8x32xbf16> to vector<8x32xbf16>
    %32 = vector.shape_cast %29 : vector<8x32xbf16> to vector<1x8x32xbf16>
    tpu.vector_store %arg24[%c0_24, %c0_25, %c0_26], %32 {strides = array<i32>} : memref<3x8x32xbf16, #tpu.memory_space<vmem>>, vector<1x8x32xbf16>,
    %33 = arith.truncf %21 : vector<8x32xf32> to vector<8x32xbf16>
    %c1 = arith.constant 1 : index
    %c0_27 = arith.constant 0 : index
    %c0_28 = arith.constant 0 : index
    %34 = vector.load %arg24[%c1, %c0_27, %c0_28] : memref<3x8x32xbf16, #tpu.memory_space<vmem>>, vector<1x8x32xbf16>
    %35 = vector.shape_cast %34 : vector<1x8x32xbf16> to vector<8x32xbf16>
    %36 = vector.shape_cast %33 : vector<8x32xbf16> to vector<1x8x32xbf16>
    tpu.vector_store %arg24[%c1, %c0_27, %c0_28], %36 {strides = array<i32>} : memref<3x8x32xbf16, #tpu.memory_space<vmem>>, vector<1x8x32xbf16>,
    %37 = arith.truncf %28 : vector<8x32xf32> to vector<8x32xbf16>
    %c2 = arith.constant 2 : index
    %c0_29 = arith.constant 0 : index
    %c0_30 = arith.constant 0 : index
    %38 = vector.load %arg24[%c2, %c0_29, %c0_30] : memref<3x8x32xbf16, #tpu.memory_space<vmem>>, vector<1x8x32xbf16>
    %39 = vector.shape_cast %38 : vector<1x8x32xbf16> to vector<8x32xbf16>
    %40 = vector.shape_cast %37 : vector<8x32xbf16> to vector<1x8x32xbf16>
    tpu.vector_store %arg24[%c2, %c0_29, %c0_30], %40 {strides = array<i32>} : memref<3x8x32xbf16, #tpu.memory_space<vmem>>, vector<1x8x32xbf16>,
    %c0_i32_31 = arith.constant 0 : i32
    %c8_i32 = arith.constant 8 : i32
    %41 = arith.muli %c0_i32_31, %c8_i32 : i32
    %c0_32 = arith.constant 0 : index
    %42 = arith.index_cast %41 : i32 to index
    %c0_33 = arith.constant 0 : index
    %43 = vector.load %arg24[%c0_32, %42, %c0_33] : memref<3x8x32xbf16, #tpu.memory_space<vmem>>, vector<1x8x8xbf16>
    %44 = vector.shape_cast %43 : vector<1x8x8xbf16> to vector<8x8xbf16>
    %c1_34 = arith.constant 1 : index
    %45 = arith.index_cast %41 : i32 to index
    %c0_35 = arith.constant 0 : index
    %46 = vector.load %arg24[%c1_34, %45, %c0_35] : memref<3x8x32xbf16, #tpu.memory_space<vmem>>, vector<1x8x8xbf16>
    %47 = vector.shape_cast %46 : vector<1x8x8xbf16> to vector<8x8xbf16>
    %c2_36 = arith.constant 2 : index
    %48 = arith.index_cast %41 : i32 to index
    %c0_37 = arith.constant 0 : index
    %49 = vector.load %arg24[%c2_36, %48, %c0_37] : memref<3x8x32xbf16, #tpu.memory_space<vmem>>, vector<1x8x8xbf16>
    %50 = vector.shape_cast %49 : vector<1x8x8xbf16> to vector<8x8xbf16>
    %cst_38 = arith.constant dense<0.000000e+00> : vector<8x8xf32>
    %51 = tpu.matmul %44, %47, %cst_38 {dimension_numbers = #tpu.dot_dimension_numbers<[1], [1], [0], [0], [0, 0, 1, 0], [], []>} : vector<8x8xbf16>, vector<8x8xbf16>, vector<8x8xf32> -> vector<8x8xf32>
    %cst_39 = arith.constant 0.353553385 : f32
    %52 = vector.broadcast %cst_39 : f32 to vector<8x8xf32>
    %53 = arith.mulf %51, %52 : vector<8x8xf32>
    %cst_40 = arith.constant dense<0xFF800000> : vector<8xf32>
    %54 = vector.multi_reduction <maximumf>, %53, %cst_40 [1] : vector<8x8xf32> to vector<8xf32>
    %55 = vector.shape_cast %54 : vector<8xf32> to vector<8x1xf32>
    %56 = vector.broadcast %55 : vector<8x1xf32> to vector<8x8xf32>
    %57 = arith.subf %53, %56 : vector<8x8xf32>
    %58 = math.exp %57 : vector<8x8xf32>
    %cst_41 = arith.constant dense<0.000000e+00> : vector<8xf32>
    %59 = vector.multi_reduction <add>, %58, %cst_41 [1] : vector<8x8xf32> to vector<8xf32>
    %60 = vector.shape_cast %59 : vector<8xf32> to vector<8x1xf32>
    %61 = tpu.reciprocal %60 {approx = true} : vector<8x1xf32> -> vector<8x1xf32>
    %62 = vector.broadcast %61 : vector<8x1xf32> to vector<8x8xf32>
    %63 = arith.mulf %58, %62 : vector<8x8xf32>
    %64 = arith.truncf %63 : vector<8x8xf32> to vector<8x8xbf16>
    %cst_42 = arith.constant dense<0.000000e+00> : vector<8x8xf32>
    %65 = tpu.matmul %64, %50, %cst_42 {dimension_numbers = #tpu.dot_dimension_numbers<[1], [0], [0], [1], [0, 0, 1, 1], [], []>} : vector<8x8xbf16>, vector<8x8xbf16>, vector<8x8xf32> -> vector<8x8xf32>
    %66 = arith.truncf %65 : vector<8x8xf32> to vector<8x8xbf16>
    %67 = arith.index_cast %41 : i32 to index
    %c0_43 = arith.constant 0 : index
    %68 = vector.load %arg25[%67, %c0_43] : memref<8x32xbf16, #tpu.memory_space<vmem>>, vector<8x8xbf16>
    tpu.vector_store %arg25[%67, %c0_43], %66 {strides = array<i32>} : memref<8x32xbf16, #tpu.memory_space<vmem>>, vector<8x8xbf16>,
    %c0_44 = arith.constant 0 : index
    %69 = arith.index_cast %41 : i32 to index
    %c8 = arith.constant 8 : index
    %70 = vector.load %arg24[%c0_44, %69, %c8] : memref<3x8x32xbf16, #tpu.memory_space<vmem>>, vector<1x8x8xbf16>
    %71 = vector.shape_cast %70 : vector<1x8x8xbf16> to vector<8x8xbf16>
    %c1_45 = arith.constant 1 : index
    %72 = arith.index_cast %41 : i32 to index
    %c8_46 = arith.constant 8 : index
    %73 = vector.load %arg24[%c1_45, %72, %c8_46] : memref<3x8x32xbf16, #tpu.memory_space<vmem>>, vector<1x8x8xbf16>
    %74 = vector.shape_cast %73 : vector<1x8x8xbf16> to vector<8x8xbf16>
    %c2_47 = arith.constant 2 : index
    %75 = arith.index_cast %41 : i32 to index
    %c8_48 = arith.constant 8 : index
    %76 = vector.load %arg24[%c2_47, %75, %c8_48] : memref<3x8x32xbf16, #tpu.memory_space<vmem>>, vector<1x8x8xbf16>
    %77 = vector.shape_cast %76 : vector<1x8x8xbf16> to vector<8x8xbf16>
    %cst_49 = arith.constant dense<0.000000e+00> : vector<8x8xf32>
    %78 = tpu.matmul %71, %74, %cst_49 {dimension_numbers = #tpu.dot_dimension_numbers<[1], [1], [0], [0], [0, 0, 1, 0], [], []>} : vector<8x8xbf16>, vector<8x8xbf16>, vector<8x8xf32> -> vector<8x8xf32>
    %cst_50 = arith.constant 0.353553385 : f32
    %79 = vector.broadcast %cst_50 : f32 to vector<8x8xf32>
    %80 = arith.mulf %78, %79 : vector<8x8xf32>
    %cst_51 = arith.constant dense<0xFF800000> : vector<8xf32>
    %81 = vector.multi_reduction <maximumf>, %80, %cst_51 [1] : vector<8x8xf32> to vector<8xf32>
    %82 = vector.shape_cast %81 : vector<8xf32> to vector<8x1xf32>
    %83 = vector.broadcast %82 : vector<8x1xf32> to vector<8x8xf32>
    %84 = arith.subf %80, %83 : vector<8x8xf32>
    %85 = math.exp %84 : vector<8x8xf32>
    %cst_52 = arith.constant dense<0.000000e+00> : vector<8xf32>
    %86 = vector.multi_reduction <add>, %85, %cst_52 [1] : vector<8x8xf32> to vector<8xf32>
    %87 = vector.shape_cast %86 : vector<8xf32> to vector<8x1xf32>
    %88 = tpu.reciprocal %87 {approx = true} : vector<8x1xf32> -> vector<8x1xf32>
    %89 = vector.broadcast %88 : vector<8x1xf32> to vector<8x8xf32>
    %90 = arith.mulf %85, %89 : vector<8x8xf32>
    %91 = arith.truncf %90 : vector<8x8xf32> to vector<8x8xbf16>
    %cst_53 = arith.constant dense<0.000000e+00> : vector<8x8xf32>
    %92 = tpu.matmul %91, %77, %cst_53 {dimension_numbers = #tpu.dot_dimension_numbers<[1], [0], [0], [1], [0, 0, 1, 1], [], []>} : vector<8x8xbf16>, vector<8x8xbf16>, vector<8x8xf32> -> vector<8x8xf32>
    %93 = arith.truncf %92 : vector<8x8xf32> to vector<8x8xbf16>
    %94 = arith.index_cast %41 : i32 to index
    %c8_54 = arith.constant 8 : index
    %95 = vector.load %arg25[%94, %c8_54] : memref<8x32xbf16, #tpu.memory_space<vmem>>, vector<8x8xbf16>
    tpu.vector_store %arg25[%94, %c8_54], %93 {strides = array<i32>} : memref<8x32xbf16, #tpu.memory_space<vmem>>, vector<8x8xbf16>,
    %c0_55 = arith.constant 0 : index
    %96 = arith.index_cast %41 : i32 to index
    %c16 = arith.constant 16 : index
    %97 = vector.load %arg24[%c0_55, %96, %c16] : memref<3x8x32xbf16, #tpu.memory_space<vmem>>, vector<1x8x8xbf16>
    %98 = vector.shape_cast %97 : vector<1x8x8xbf16> to vector<8x8xbf16>
    %c1_56 = arith.constant 1 : index
    %99 = arith.index_cast %41 : i32 to index
    %c16_57 = arith.constant 16 : index
    %100 = vector.load %arg24[%c1_56, %99, %c16_57] : memref<3x8x32xbf16, #tpu.memory_space<vmem>>, vector<1x8x8xbf16>
    %101 = vector.shape_cast %100 : vector<1x8x8xbf16> to vector<8x8xbf16>
    %c2_58 = arith.constant 2 : index
    %102 = arith.index_cast %41 : i32 to index
    %c16_59 = arith.constant 16 : index
    %103 = vector.load %arg24[%c2_58, %102, %c16_59] : memref<3x8x32xbf16, #tpu.memory_space<vmem>>, vector<1x8x8xbf16>
    %104 = vector.shape_cast %103 : vector<1x8x8xbf16> to vector<8x8xbf16>
    %cst_60 = arith.constant dense<0.000000e+00> : vector<8x8xf32>
    %105 = tpu.matmul %98, %101, %cst_60 {dimension_numbers = #tpu.dot_dimension_numbers<[1], [1], [0], [0], [0, 0, 1, 0], [], []>} : vector<8x8xbf16>, vector<8x8xbf16>, vector<8x8xf32> -> vector<8x8xf32>
    %cst_61 = arith.constant 0.353553385 : f32
    %106 = vector.broadcast %cst_61 : f32 to vector<8x8xf32>
    %107 = arith.mulf %105, %106 : vector<8x8xf32>
    %cst_62 = arith.constant dense<0xFF800000> : vector<8xf32>
    %108 = vector.multi_reduction <maximumf>, %107, %cst_62 [1] : vector<8x8xf32> to vector<8xf32>
    %109 = vector.shape_cast %108 : vector<8xf32> to vector<8x1xf32>
    %110 = vector.broadcast %109 : vector<8x1xf32> to vector<8x8xf32>
    %111 = arith.subf %107, %110 : vector<8x8xf32>
    %112 = math.exp %111 : vector<8x8xf32>
    %cst_63 = arith.constant dense<0.000000e+00> : vector<8xf32>
    %113 = vector.multi_reduction <add>, %112, %cst_63 [1] : vector<8x8xf32> to vector<8xf32>
    %114 = vector.shape_cast %113 : vector<8xf32> to vector<8x1xf32>
    %115 = tpu.reciprocal %114 {approx = true} : vector<8x1xf32> -> vector<8x1xf32>
    %116 = vector.broadcast %115 : vector<8x1xf32> to vector<8x8xf32>
    %117 = arith.mulf %112, %116 : vector<8x8xf32>
    %118 = arith.truncf %117 : vector<8x8xf32> to vector<8x8xbf16>
    %cst_64 = arith.constant dense<0.000000e+00> : vector<8x8xf32>
    %119 = tpu.matmul %118, %104, %cst_64 {dimension_numbers = #tpu.dot_dimension_numbers<[1], [0], [0], [1], [0, 0, 1, 1], [], []>} : vector<8x8xbf16>, vector<8x8xbf16>, vector<8x8xf32> -> vector<8x8xf32>
    %120 = arith.truncf %119 : vector<8x8xf32> to vector<8x8xbf16>
    %121 = arith.index_cast %41 : i32 to index
    %c16_65 = arith.constant 16 : index
    %122 = vector.load %arg25[%121, %c16_65] : memref<8x32xbf16, #tpu.memory_space<vmem>>, vector<8x8xbf16>
    tpu.vector_store %arg25[%121, %c16_65], %120 {strides = array<i32>} : memref<8x32xbf16, #tpu.memory_space<vmem>>, vector<8x8xbf16>,
    %c0_66 = arith.constant 0 : index
    %123 = arith.index_cast %41 : i32 to index
    %c24 = arith.constant 24 : index
    %124 = vector.load %arg24[%c0_66, %123, %c24] : memref<3x8x32xbf16, #tpu.memory_space<vmem>>, vector<1x8x8xbf16>
    %125 = vector.shape_cast %124 : vector<1x8x8xbf16> to vector<8x8xbf16>
    %c1_67 = arith.constant 1 : index
    %126 = arith.index_cast %41 : i32 to index
    %c24_68 = arith.constant 24 : index
    %127 = vector.load %arg24[%c1_67, %126, %c24_68] : memref<3x8x32xbf16, #tpu.memory_space<vmem>>, vector<1x8x8xbf16>
    %128 = vector.shape_cast %127 : vector<1x8x8xbf16> to vector<8x8xbf16>
    %c2_69 = arith.constant 2 : index
    %129 = arith.index_cast %41 : i32 to index
    %c24_70 = arith.constant 24 : index
    %130 = vector.load %arg24[%c2_69, %129, %c24_70] : memref<3x8x32xbf16, #tpu.memory_space<vmem>>, vector<1x8x8xbf16>
    %131 = vector.shape_cast %130 : vector<1x8x8xbf16> to vector<8x8xbf16>
    %cst_71 = arith.constant dense<0.000000e+00> : vector<8x8xf32>
    %132 = tpu.matmul %125, %128, %cst_71 {dimension_numbers = #tpu.dot_dimension_numbers<[1], [1], [0], [0], [0, 0, 1, 0], [], []>} : vector<8x8xbf16>, vector<8x8xbf16>, vector<8x8xf32> -> vector<8x8xf32>
    %cst_72 = arith.constant 0.353553385 : f32
    %133 = vector.broadcast %cst_72 : f32 to vector<8x8xf32>
    %134 = arith.mulf %132, %133 : vector<8x8xf32>
    %cst_73 = arith.constant dense<0xFF800000> : vector<8xf32>
    %135 = vector.multi_reduction <maximumf>, %134, %cst_73 [1] : vector<8x8xf32> to vector<8xf32>
    %136 = vector.shape_cast %135 : vector<8xf32> to vector<8x1xf32>
    %137 = vector.broadcast %136 : vector<8x1xf32> to vector<8x8xf32>
    %138 = arith.subf %134, %137 : vector<8x8xf32>
    %139 = math.exp %138 : vector<8x8xf32>
    %cst_74 = arith.constant dense<0.000000e+00> : vector<8xf32>
    %140 = vector.multi_reduction <add>, %139, %cst_74 [1] : vector<8x8xf32> to vector<8xf32>
    %141 = vector.shape_cast %140 : vector<8xf32> to vector<8x1xf32>
    %142 = tpu.reciprocal %141 {approx = true} : vector<8x1xf32> -> vector<8x1xf32>
    %143 = vector.broadcast %142 : vector<8x1xf32> to vector<8x8xf32>
    %144 = arith.mulf %139, %143 : vector<8x8xf32>
    %145 = arith.truncf %144 : vector<8x8xf32> to vector<8x8xbf16>
    %cst_75 = arith.constant dense<0.000000e+00> : vector<8x8xf32>
    %146 = tpu.matmul %145, %131, %cst_75 {dimension_numbers = #tpu.dot_dimension_numbers<[1], [0], [0], [1], [0, 0, 1, 1], [], []>} : vector<8x8xbf16>, vector<8x8xbf16>, vector<8x8xf32> -> vector<8x8xf32>
    %147 = arith.truncf %146 : vector<8x8xf32> to vector<8x8xbf16>
    %148 = arith.index_cast %41 : i32 to index
    %c24_76 = arith.constant 24 : index
    %149 = vector.load %arg25[%148, %c24_76] : memref<8x32xbf16, #tpu.memory_space<vmem>>, vector<8x8xbf16>
    tpu.vector_store %arg25[%148, %c24_76], %147 {strides = array<i32>} : memref<8x32xbf16, #tpu.memory_space<vmem>>, vector<8x8xbf16>,
    %c1_i32 = arith.constant 1 : i32
    %c0_77 = arith.constant 0 : index
    %c0_78 = arith.constant 0 : index
    %150 = vector.load %arg25[%c0_77, %c0_78] : memref<8x32xbf16, #tpu.memory_space<vmem>>, vector<8x32xbf16>
    %c0_79 = arith.constant 0 : index
    %c0_80 = arith.constant 0 : index
    %c0_81 = arith.constant 0 : index
    %151 = vector.load %arg7[%c0_79, %c0_80, %c0_81] : memref<1x32x32xbf16, #tpu.memory_space<vmem>>, vector<1x32x32xbf16>
    %152 = vector.shape_cast %151 : vector<1x32x32xbf16> to vector<32x32xbf16>
    %cst_82 = arith.constant dense<0.000000e+00> : vector<8x32xf32>
    %153 = tpu.matmul %150, %152, %cst_82 {dimension_numbers = #tpu.dot_dimension_numbers<[1], [0], [0], [1], [0, 0, 1, 1], [], []>} : vector<8x32xbf16>, vector<32x32xbf16>, vector<8x32xf32> -> vector<8x32xf32>
    %c0_83 = arith.constant 0 : index
    %c0_84 = arith.constant 0 : index
    %c0_85 = arith.constant 0 : index
    %154 = vector.load %arg11[%c0_83, %c0_84, %c0_85] : memref<1x1x32xf32, #tpu.memory_space<vmem>>, vector<1x1x32xf32>
    %155 = vector.shape_cast %154 : vector<1x1x32xf32> to vector<1x32xf32>
    %156 = vector.broadcast %155 : vector<1x32xf32> to vector<8x32xf32>
    %157 = arith.addf %153, %156 : vector<8x32xf32>
    %158 = arith.addf %3, %157 : vector<8x32xf32>
    %c0_86 = arith.constant 0 : index
    %c0_87 = arith.constant 0 : index
    %c0_88 = arith.constant 0 : index
    %159 = vector.load %arg12[%c0_86, %c0_87, %c0_88] : memref<1x1x32xf32, #tpu.memory_space<vmem>>, vector<1x1x32xf32>
    %160 = vector.shape_cast %159 : vector<1x1x32xf32> to vector<1x32xf32>
    %c0_89 = arith.constant 0 : index
    %c0_90 = arith.constant 0 : index
    %c0_91 = arith.constant 0 : index
    %161 = vector.load %arg13[%c0_89, %c0_90, %c0_91] : memref<1x1x32xf32, #tpu.memory_space<vmem>>, vector<1x1x32xf32>
    %162 = vector.shape_cast %161 : vector<1x1x32xf32> to vector<1x32xf32>
    %cst_92 = arith.constant dense<0.000000e+00> : vector<8xf32>
    %163 = vector.multi_reduction <add>, %158, %cst_92 [1] : vector<8x32xf32> to vector<8xf32>
    %164 = vector.shape_cast %163 : vector<8xf32> to vector<8x1xf32>
    %cst_93 = arith.constant 3.200000e+01 : f32
    %165 = vector.broadcast %cst_93 : f32 to vector<8x1xf32>
    %166 = arith.divf %164, %165 : vector<8x1xf32>
    %167 = vector.broadcast %166 : vector<8x1xf32> to vector<8x32xf32>
    %168 = arith.subf %158, %167 : vector<8x32xf32>
    %169 = arith.mulf %168, %168 : vector<8x32xf32>
    %cst_94 = arith.constant dense<0.000000e+00> : vector<8xf32>
    %170 = vector.multi_reduction <add>, %169, %cst_94 [1] : vector<8x32xf32> to vector<8xf32>
    %171 = vector.shape_cast %170 : vector<8xf32> to vector<8x1xf32>
    %cst_95 = arith.constant 3.200000e+01 : f32
    %172 = vector.broadcast %cst_95 : f32 to vector<8x1xf32>
    %173 = arith.divf %171, %172 : vector<8x1xf32>
    %cst_96 = arith.constant 9.99999974E-6 : f32
    %174 = vector.broadcast %cst_96 : f32 to vector<8x1xf32>
    %175 = arith.addf %173, %174 : vector<8x1xf32>
    %176 = math.rsqrt %175 : vector<8x1xf32>
    %177 = vector.broadcast %176 : vector<8x1xf32> to vector<8x32xf32>
    %178 = arith.mulf %168, %177 : vector<8x32xf32>
    %179 = vector.broadcast %160 : vector<1x32xf32> to vector<8x32xf32>
    %180 = arith.mulf %178, %179 : vector<8x32xf32>
    %181 = vector.broadcast %162 : vector<1x32xf32> to vector<8x32xf32>
    %182 = arith.addf %180, %181 : vector<8x32xf32>
    %183 = arith.truncf %182 : vector<8x32xf32> to vector<8x32xbf16>
    %c0_97 = arith.constant 0 : index
    %c0_98 = arith.constant 0 : index
    %c0_99 = arith.constant 0 : index
    %184 = vector.load %arg16[%c0_97, %c0_98, %c0_99] : memref<1x32x64xbf16, #tpu.memory_space<vmem>>, vector<1x32x64xbf16>
    %185 = vector.shape_cast %184 : vector<1x32x64xbf16> to vector<32x64xbf16>
    %cst_100 = arith.constant dense<0.000000e+00> : vector<8x64xf32>
    %186 = tpu.matmul %183, %185, %cst_100 {dimension_numbers = #tpu.dot_dimension_numbers<[1], [0], [0], [1], [0, 0, 1, 1], [], []>} : vector<8x32xbf16>, vector<32x64xbf16>, vector<8x64xf32> -> vector<8x64xf32>
    %c0_101 = arith.constant 0 : index
    %c0_102 = arith.constant 0 : index
    %c0_103 = arith.constant 0 : index
    %187 = vector.load %arg17[%c0_101, %c0_102, %c0_103] : memref<1x1x64xf32, #tpu.memory_space<vmem>>, vector<1x1x64xf32>
    %188 = vector.shape_cast %187 : vector<1x1x64xf32> to vector<1x64xf32>
    %189 = vector.broadcast %188 : vector<1x64xf32> to vector<8x64xf32>
    %190 = arith.addf %186, %189 : vector<8x64xf32>
    %cst_104 = arith.constant 0.000000e+00 : f32
    %191 = vector.broadcast %cst_104 : f32 to vector<8x64xf32>
    %192 = arith.maximumf %190, %191 : vector<8x64xf32>
    %193 = arith.truncf %192 : vector<8x64xf32> to vector<8x64xbf16>
    %c0_105 = arith.constant 0 : index
    %c0_106 = arith.constant 0 : index
    %c0_107 = arith.constant 0 : index
    %194 = vector.load %arg18[%c0_105, %c0_106, %c0_107] : memref<1x64x32xbf16, #tpu.memory_space<vmem>>, vector<1x64x32xbf16>
    %195 = vector.shape_cast %194 : vector<1x64x32xbf16> to vector<64x32xbf16>
    %cst_108 = arith.constant dense<0.000000e+00> : vector<8x32xf32>
    %196 = tpu.matmul %193, %195, %cst_108 {dimension_numbers = #tpu.dot_dimension_numbers<[1], [0], [0], [1], [0, 0, 1, 1], [], []>} : vector<8x64xbf16>, vector<64x32xbf16>, vector<8x32xf32> -> vector<8x32xf32>
    %c0_109 = arith.constant 0 : index
    %c0_110 = arith.constant 0 : index
    %c0_111 = arith.constant 0 : index
    %197 = vector.load %arg19[%c0_109, %c0_110, %c0_111] : memref<1x1x32xf32, #tpu.memory_space<vmem>>, vector<1x1x32xf32>
    %198 = vector.shape_cast %197 : vector<1x1x32xf32> to vector<1x32xf32>
    %199 = vector.broadcast %198 : vector<1x32xf32> to vector<8x32xf32>
    %200 = arith.addf %196, %199 : vector<8x32xf32>
    %201 = arith.addf %182, %200 : vector<8x32xf32>
    %c0_112 = arith.constant 0 : index
    %c0_113 = arith.constant 0 : index
    %c0_114 = arith.constant 0 : index
    %202 = vector.load %arg14[%c0_112, %c0_113, %c0_114] : memref<1x1x32xf32, #tpu.memory_space<vmem>>, vector<1x1x32xf32>
    %203 = vector.shape_cast %202 : vector<1x1x32xf32> to vector<1x32xf32>
    %c0_115 = arith.constant 0 : index
    %c0_116 = arith.constant 0 : index
    %c0_117 = arith.constant 0 : index
    %204 = vector.load %arg15[%c0_115, %c0_116, %c0_117] : memref<1x1x32xf32, #tpu.memory_space<vmem>>, vector<1x1x32xf32>
    %205 = vector.shape_cast %204 : vector<1x1x32xf32> to vector<1x32xf32>
    %cst_118 = arith.constant dense<0.000000e+00> : vector<8xf32>
    %206 = vector.multi_reduction <add>, %201, %cst_118 [1] : vector<8x32xf32> to vector<8xf32>
    %207 = vector.shape_cast %206 : vector<8xf32> to vector<8x1xf32>
    %cst_119 = arith.constant 3.200000e+01 : f32
    %208 = vector.broadcast %cst_119 : f32 to vector<8x1xf32>
    %209 = arith.divf %207, %208 : vector<8x1xf32>
    %210 = vector.broadcast %209 : vector<8x1xf32> to vector<8x32xf32>
    %211 = arith.subf %201, %210 : vector<8x32xf32>
    %212 = arith.mulf %211, %211 : vector<8x32xf32>
    %cst_120 = arith.constant dense<0.000000e+00> : vector<8xf32>
    %213 = vector.multi_reduction <add>, %212, %cst_120 [1] : vector<8x32xf32> to vector<8xf32>
    %214 = vector.shape_cast %213 : vector<8xf32> to vector<8x1xf32>
    %cst_121 = arith.constant 3.200000e+01 : f32
    %215 = vector.broadcast %cst_121 : f32 to vector<8x1xf32>
    %216 = arith.divf %214, %215 : vector<8x1xf32>
    %cst_122 = arith.constant 9.99999974E-6 : f32
    %217 = vector.broadcast %cst_122 : f32 to vector<8x1xf32>
    %218 = arith.addf %216, %217 : vector<8x1xf32>
    %219 = math.rsqrt %218 : vector<8x1xf32>
    %220 = vector.broadcast %219 : vector<8x1xf32> to vector<8x32xf32>
    %221 = arith.mulf %211, %220 : vector<8x32xf32>
    %222 = vector.broadcast %203 : vector<1x32xf32> to vector<8x32xf32>
    %223 = arith.mulf %221, %222 : vector<8x32xf32>
    %224 = vector.broadcast %205 : vector<1x32xf32> to vector<8x32xf32>
    %225 = arith.addf %223, %224 : vector<8x32xf32>
    %c0_123 = arith.constant 0 : index
    %c0_124 = arith.constant 0 : index
    %226 = vector.load %arg23[%c0_123, %c0_124] : memref<8x32xf32, #tpu.memory_space<vmem>>, vector<8x32xf32>
    tpu.vector_store %arg23[%c0_123, %c0_124], %225 {strides = array<i32>} : memref<8x32xf32, #tpu.memory_space<vmem>>, vector<8x32xf32>,
    %c1_i32_125 = arith.constant 1 : i32
    %227 = arith.cmpi eq, %arg1, %c1_i32_125 : i32
    %228 = arith.extui %227 : i1 to i32
    %c0_i32_126 = arith.constant 0 : i32
    %229 = arith.cmpi ne, %228, %c0_i32_126 : i32
    scf.if %229 {
      %c0_127 = arith.constant 0 : index
      %c0_128 = arith.constant 0 : index
      %230 = vector.load %arg20[%c0_127, %c0_128] : memref<1x32xf32, #tpu.memory_space<vmem>>, vector<1x32xf32>
      %c0_129 = arith.constant 0 : index
      %c0_130 = arith.constant 0 : index
      %231 = vector.load %arg21[%c0_129, %c0_130] : memref<1x32xf32, #tpu.memory_space<vmem>>, vector<1x32xf32>
      %cst_131 = arith.constant dense<0.000000e+00> : vector<8xf32>
      %232 = vector.multi_reduction <add>, %225, %cst_131 [1] : vector<8x32xf32> to vector<8xf32>
      %233 = vector.shape_cast %232 : vector<8xf32> to vector<8x1xf32>
      %cst_132 = arith.constant 3.200000e+01 : f32
      %234 = vector.broadcast %cst_132 : f32 to vector<8x1xf32>
      %235 = arith.divf %233, %234 : vector<8x1xf32>
      %236 = vector.broadcast %235 : vector<8x1xf32> to vector<8x32xf32>
      %237 = arith.subf %225, %236 : vector<8x32xf32>
      %238 = arith.mulf %237, %237 : vector<8x32xf32>
      %cst_133 = arith.constant dense<0.000000e+00> : vector<8xf32>
      %239 = vector.multi_reduction <add>, %238, %cst_133 [1] : vector<8x32xf32> to vector<8xf32>
      %240 = vector.shape_cast %239 : vector<8xf32> to vector<8x1xf32>
      %cst_134 = arith.constant 3.200000e+01 : f32
      %241 = vector.broadcast %cst_134 : f32 to vector<8x1xf32>
      %242 = arith.divf %240, %241 : vector<8x1xf32>
      %cst_135 = arith.constant 9.99999974E-6 : f32
      %243 = vector.broadcast %cst_135 : f32 to vector<8x1xf32>
      %244 = arith.addf %242, %243 : vector<8x1xf32>
      %245 = math.rsqrt %244 : vector<8x1xf32>
      %246 = vector.broadcast %245 : vector<8x1xf32> to vector<8x32xf32>
      %247 = arith.mulf %237, %246 : vector<8x32xf32>
      %248 = vector.broadcast %230 : vector<1x32xf32> to vector<8x32xf32>
      %249 = arith.mulf %247, %248 : vector<8x32xf32>
      %250 = vector.broadcast %231 : vector<1x32xf32> to vector<8x32xf32>
      %251 = arith.addf %249, %250 : vector<8x32xf32>
      %c0_136 = arith.constant 0 : index
      %c0_137 = arith.constant 0 : index
      %252 = vector.load %arg22[%c0_136, %c0_137] : memref<8x32xf32, #tpu.memory_space<vmem>>, vector<8x32xf32>
      tpu.vector_store %arg22[%c0_136, %c0_137], %251 {strides = array<i32>} : memref<8x32xf32, #tpu.memory_space<vmem>>, vector<8x32xf32>,
    } else {
    }
    return
  }
  func.func @transform_0(%arg0: i32, %arg1: i32) -> (i32, i32) {
    %c0_i32 = arith.constant 0 : i32
    %c0_i32_0 = arith.constant 0 : i32
    return %arg0, %c0_i32 : i32, i32
  }
  func.func @transform_1(%arg0: i32, %arg1: i32) -> (i32, i32) {
    %c0_i32 = arith.constant 0 : i32
    %c0_i32_0 = arith.constant 0 : i32
    return %arg0, %c0_i32 : i32, i32
  }
  func.func @transform_2(%arg0: i32, %arg1: i32) -> (i32, i32, i32) {
    %c0_i32 = arith.constant 0 : i32
    %c0_i32_0 = arith.constant 0 : i32
    %c0_i32_1 = arith.constant 0 : i32
    return %arg1, %c0_i32, %c0_i32_0 : i32, i32, i32
  }
  func.func @transform_3(%arg0: i32, %arg1: i32) -> (i32, i32, i32) {
    %c0_i32 = arith.constant 0 : i32
    %c0_i32_0 = arith.constant 0 : i32
    %c0_i32_1 = arith.constant 0 : i32
    return %arg1, %c0_i32, %c0_i32_0 : i32, i32, i32
  }
  func.func @transform_4(%arg0: i32, %arg1: i32) -> (i32, i32, i32) {
    %c0_i32 = arith.constant 0 : i32
    %c0_i32_0 = arith.constant 0 : i32
    %c0_i32_1 = arith.constant 0 : i32
    return %arg1, %c0_i32, %c0_i32_0 : i32, i32, i32
  }
  func.func @transform_5(%arg0: i32, %arg1: i32) -> (i32, i32, i32) {
    %c0_i32 = arith.constant 0 : i32
    %c0_i32_0 = arith.constant 0 : i32
    %c0_i32_1 = arith.constant 0 : i32
    return %arg1, %c0_i32, %c0_i32_0 : i32, i32, i32
  }
  func.func @transform_6(%arg0: i32, %arg1: i32) -> (i32, i32, i32) {
    %c0_i32 = arith.constant 0 : i32
    %c0_i32_0 = arith.constant 0 : i32
    %c0_i32_1 = arith.constant 0 : i32
    return %arg1, %c0_i32, %c0_i32_0 : i32, i32, i32
  }
  func.func @transform_7(%arg0: i32, %arg1: i32) -> (i32, i32, i32) {
    %c0_i32 = arith.constant 0 : i32
    %c0_i32_0 = arith.constant 0 : i32
    %c0_i32_1 = arith.constant 0 : i32
    return %arg1, %c0_i32, %c0_i32_0 : i32, i32, i32
  }
  func.func @transform_8(%arg0: i32, %arg1: i32) -> (i32, i32, i32) {
    %c0_i32 = arith.constant 0 : i32
    %c0_i32_0 = arith.constant 0 : i32
    %c0_i32_1 = arith.constant 0 : i32
    return %arg1, %c0_i32, %c0_i32_0 : i32, i32, i32
  }
  func.func @transform_9(%arg0: i32, %arg1: i32) -> (i32, i32, i32) {
    %c0_i32 = arith.constant 0 : i32
    %c0_i32_0 = arith.constant 0 : i32
    %c0_i32_1 = arith.constant 0 : i32
    return %arg1, %c0_i32, %c0_i32_0 : i32, i32, i32
  }
  func.func @transform_10(%arg0: i32, %arg1: i32) -> (i32, i32, i32) {
    %c0_i32 = arith.constant 0 : i32
    %c0_i32_0 = arith.constant 0 : i32
    %c0_i32_1 = arith.constant 0 : i32
    return %arg1, %c0_i32, %c0_i32_0 : i32, i32, i32
  }
  func.func @transform_11(%arg0: i32, %arg1: i32) -> (i32, i32, i32) {
    %c0_i32 = arith.constant 0 : i32
    %c0_i32_0 = arith.constant 0 : i32
    %c0_i32_1 = arith.constant 0 : i32
    return %arg1, %c0_i32, %c0_i32_0 : i32, i32, i32
  }
  func.func @transform_12(%arg0: i32, %arg1: i32) -> (i32, i32, i32) {
    %c0_i32 = arith.constant 0 : i32
    %c0_i32_0 = arith.constant 0 : i32
    %c0_i32_1 = arith.constant 0 : i32
    return %arg1, %c0_i32, %c0_i32_0 : i32, i32, i32
  }
  func.func @transform_13(%arg0: i32, %arg1: i32) -> (i32, i32, i32) {
    %c0_i32 = arith.constant 0 : i32
    %c0_i32_0 = arith.constant 0 : i32
    %c0_i32_1 = arith.constant 0 : i32
    return %arg1, %c0_i32, %c0_i32_0 : i32, i32, i32
  }
  func.func @transform_14(%arg0: i32, %arg1: i32) -> (i32, i32, i32) {
    %c0_i32 = arith.constant 0 : i32
    %c0_i32_0 = arith.constant 0 : i32
    %c0_i32_1 = arith.constant 0 : i32
    return %arg1, %c0_i32, %c0_i32_0 : i32, i32, i32
  }
  func.func @transform_15(%arg0: i32, %arg1: i32) -> (i32, i32, i32) {
    %c0_i32 = arith.constant 0 : i32
    %c0_i32_0 = arith.constant 0 : i32
    %c0_i32_1 = arith.constant 0 : i32
    return %arg1, %c0_i32, %c0_i32_0 : i32, i32, i32
  }
  func.func @transform_16(%arg0: i32, %arg1: i32) -> (i32, i32, i32) {
    %c0_i32 = arith.constant 0 : i32
    %c0_i32_0 = arith.constant 0 : i32
    %c0_i32_1 = arith.constant 0 : i32
    return %arg1, %c0_i32, %c0_i32_0 : i32, i32, i32
  }
  func.func @transform_17(%arg0: i32, %arg1: i32) -> (i32, i32, i32) {
    %c0_i32 = arith.constant 0 : i32
    %c0_i32_0 = arith.constant 0 : i32
    %c0_i32_1 = arith.constant 0 : i32
    return %arg1, %c0_i32, %c0_i32_0 : i32, i32, i32
  }
  func.func @transform_18(%arg0: i32, %arg1: i32) -> (i32, i32) {
    %c0_i32 = arith.constant 0 : i32
    %c0_i32_0 = arith.constant 0 : i32
    %c0_i32_1 = arith.constant 0 : i32
    return %c0_i32, %c0_i32_0 : i32, i32
  }
  func.func @transform_19(%arg0: i32, %arg1: i32) -> (i32, i32) {
    %c0_i32 = arith.constant 0 : i32
    %c0_i32_0 = arith.constant 0 : i32
    %c0_i32_1 = arith.constant 0 : i32
    return %c0_i32, %c0_i32_0 : i32, i32
  }
  func.func @transform_20(%arg0: i32, %arg1: i32) -> (i32, i32) {
    %c0_i32 = arith.constant 0 : i32
    %c0_i32_0 = arith.constant 0 : i32
    return %arg0, %c0_i32 : i32, i32
  }
}

</mosaic_0001>

<llo_original>
// kernel: tpu_custom_call.1
$region0: #{tpu_custom_call.1}
  #allocation0 [shape = 'u32[]', space=smem, size = 0x4, offset = 0x4, fixed_abs, tag = 'smem constant byte address 0x4 - core index']
  #allocation1 [shape = 'u32[144,128]{1,0:T(1,128)}', space=vmem, size = 0x12000, scoped, tag = 'internal scratch']
  #allocation2 [shape = 'f32[8,32]{1,0:T(8,128)}', space=vmem, size = 0x1000, scoped, tag = 'scratch operand']
  #allocation3 [shape = 'bf16[3,8,32]{2,1,0:T(8,128)(2,1)}', space=vmem, size = 0x1800, scoped, tag = 'scratch operand']
  #allocation4 [shape = 'bf16[8,32]{1,0:T(8,128)(2,1)}', space=vmem, size = 0x800, scoped, tag = 'scratch operand']
  %s0 = inlined_call_operand.hbm [shape: f32[16,32], index: 0, kind: input, shape index: {}]
  %s1 = inlined_call_operand.hbm [shape: f32[16,32], index: 1, kind: input, shape index: {}]
  %s2 = inlined_call_operand.vmem [shape: bf16[2,32,32], index: 2, kind: input, shape index: {}]
  %s3 = inlined_call_operand.vmem [shape: bf16[2,32,32], index: 3, kind: input, shape index: {}]
  %s4 = inlined_call_operand.vmem [shape: bf16[2,32,32], index: 4, kind: input, shape index: {}]
  %s5 = inlined_call_operand.hbm [shape: bf16[2,32,32], index: 5, kind: input, shape index: {}]
  %s6 = inlined_call_operand.vmem [shape: f32[2,1,32], index: 6, kind: input, shape index: {}]
  %s7 = inlined_call_operand.vmem [shape: f32[2,1,32], index: 7, kind: input, shape index: {}]
  %s8 = inlined_call_operand.vmem [shape: f32[2,1,32], index: 8, kind: input, shape index: {}]
  %s9 = inlined_call_operand.vmem [shape: f32[2,1,32], index: 9, kind: input, shape index: {}]
  %s10 = inlined_call_operand.vmem [shape: f32[2,1,32], index: 10, kind: input, shape index: {}]
  %s11 = inlined_call_operand.vmem [shape: f32[2,1,32], index: 11, kind: input, shape index: {}]
  %s12 = inlined_call_operand.vmem [shape: f32[2,1,32], index: 12, kind: input, shape index: {}]
  %s13 = inlined_call_operand.vmem [shape: f32[2,1,32], index: 13, kind: input, shape index: {}]
  %s14 = inlined_call_operand.hbm [shape: bf16[2,32,64], index: 14, kind: input, shape index: {}]
  %s15 = inlined_call_operand.vmem [shape: f32[2,1,64], index: 15, kind: input, shape index: {}]
  %s16 = inlined_call_operand.vmem [shape: bf16[2,64,32], index: 16, kind: input, shape index: {}]
  %s17 = inlined_call_operand.vmem [shape: f32[2,1,32], index: 17, kind: input, shape index: {}]
  %s18 = inlined_call_operand.vmem [shape: f32[1,32], index: 18, kind: input, shape index: {}]
  %s19 = inlined_call_operand.vmem [shape: f32[1,32], index: 19, kind: input, shape index: {}]
  %s20 = inlined_call_operand.hbm [shape: f32[16,32], index: 20, kind: output, shape index: {}]
  %s21 = sld [smem:[#allocation0]]
  $region137: #{tpu_custom_call.1} parent=0
    _
  %s23 = ssub.s32 1, %s21
  %s24 = scalar_select 0, %s23, %s21
  $region1: #{tpu_custom_call.1} parent=0
    #allocation5 [shape = 'u8[8192]{0}', space=vmem, size = 0x2000, scoped, tag = 'input window, operand 0']
    #allocation6 [shape = 's32[2]{0}', space=sflag, size = 0x8, scoped, tag = 'scoped memory for tpu_custom_call.1']
    #allocation7 [shape = 's32[2]{0}', space=sflag, size = 0x8, scoped, tag = 'scoped memory for tpu_custom_call.1']
    #allocation8 [shape = 'u8[8192]{0}', space=vmem, size = 0x2000, scoped, tag = 'input window, operand 1']
    #allocation9 [shape = 's32[2]{0}', space=sflag, size = 0x8, scoped, tag = 'scoped memory for tpu_custom_call.1']
    #allocation10 [shape = 'u8[16384]{0}', space=vmem, size = 0x4000, scoped, tag = 'input window, operand 5']
    #allocation11 [shape = 'u8[16384]{0}', space=vmem, size = 0x4000, scoped, tag = 'input window, operand 14']
    #allocation12 [shape = 's32[2]{0}', space=sflag, size = 0x8, scoped, tag = 'scoped memory for tpu_custom_call.1']
    #allocation13 [shape = 'u8[8192]{0}', space=vmem, size = 0x2000, scoped, tag = 'output window, operand 0']
    %25 = vsyncpa [#allocation6], 0
    %s26 = scalar_lea.sflag [#allocation6], 1
    %27 = vsyncpa %s26, 0
    %28 = vsyncpa [#allocation9], 0
    %s29 = scalar_lea.sflag [#allocation9], 1
    %30 = vsyncpa %s29, 0
    %31 = vsyncpa [#allocation12], 0
    %s32 = scalar_lea.sflag [#allocation12], 1
    %33 = vsyncpa %s32, 0
    %34 = vsyncpa [#allocation7], 0
    %s35 = scalar_lea.sflag [#allocation7], 1
    %36 = vsyncpa %s35, 0
    loop: start=0, step=1, limit=6
    $region2: #{tpu_custom_call.1} parent=1 // loop_pre_header
      _
    $region3: #{tpu_custom_call.1} parent=1 // loop_header
      %s38 = sphi 0, %s42
      %p39 = scmp.ge.s32.totalorder %s38, 6
      %s45 = sphi 0, %s57
      %s46 = sphi 0, %s53
      %s47 = sphi 0, %s45
      %s48 = sphi 0, %s46
      %s49 = sphi 0, %s47
      %s50 = sphi 0, %s48
      %s60 = sphi 0, %s62
      %s63 = sphi 0, %s60
      %s64 = sphi 0, %s63
      %s80 = sphi 0, %s64
      %s86 = sphi 0, %s88
      %s89 = sphi 0, %s86
      %s90 = sphi 0, %s89
      %s106 = sphi 0, %s90
      %s112 = sphi 0, %s114
      %s115 = sphi 0, %s112
      %s116 = sphi 0, %s115
      %s132 = sphi 0, %s116
      %s138 = sphi 0, %s140
      %s141 = sphi 0, %s138
      %s142 = sphi 0, %s141
      %s158 = sphi 0, %s142
      %s164 = sphi 0, %s166
      %s167 = sphi 0, %s164
      %s168 = sphi 0, %s167
      %s184 = sphi 0, %s168
      %s190 = sphi 0, %s192
      %s193 = sphi 0, %s190
      %s194 = sphi 0, %s193
      %s210 = sphi 0, %s194
      %s216 = sphi 0, %s218
      %s219 = sphi 0, %s216
      %s220 = sphi 0, %s219
      %s236 = sphi 0, %s220
      %s242 = sphi 0, %s244
      %s245 = sphi 0, %s242
      %s246 = sphi 0, %s245
      %s262 = sphi 0, %s246
      %s268 = sphi 0, %s270
      %s271 = sphi 0, %s268
      %s272 = sphi 0, %s271
      %s288 = sphi 0, %s272
      %s294 = sphi 0, %s296
      %s297 = sphi 0, %s294
      %s298 = sphi 0, %s297
      %s314 = sphi 0, %s298
      %s320 = sphi 0, %s322
      %s323 = sphi 0, %s320
      %s324 = sphi 0, %s323
      %s340 = sphi 0, %s324
      %s346 = sphi 0, %s348
      %s349 = sphi 0, %s346
      %s350 = sphi 0, %s349
      %s366 = sphi 0, %s350
      %s372 = sphi 0, %s374
      %s375 = sphi 0, %s372
      %s376 = sphi 0, %s375
      %s392 = sphi 0, %s376
      %s398 = sphi 0, %s400
      %s401 = sphi 0, %s398
      %s402 = sphi 0, %s401
      %s418 = sphi 0, %s402
      %s424 = sphi 0, %s426
      %s427 = sphi 0, %s424
      %s428 = sphi 0, %s427
      %s444 = sphi 0, %s428
      %s450 = sphi 0, %s452
      %s453 = sphi 0, %s450
      %s454 = sphi 0, %s453
      %s470 = sphi 0, %s454
      %s476 = sphi 0, %s478
      %s479 = sphi 0, %s476
      %s480 = sphi 0, %s479
      %s496 = sphi 0, %s480
      %s502 = sphi 0, %s504
      %s505 = sphi 0, %s502
      %s506 = sphi 0, %s505
      %s522 = sphi 0, %s506
      %s526 = sphi 0, %s526
      %s528 = sphi 0, %s526
      %s529 = sphi 0, %s528
      %s543 = sphi 0, %s529
      %s547 = sphi 0, %s547
      %s549 = sphi 0, %s547
      %s550 = sphi 0, %s549
      %s564 = sphi 0, %s550
      %s570 = sphi 0, %s572
      %s573 = sphi 0, %s570
      %s574 = sphi 0, %s573
      %s590 = sphi 0, %s574
    $region4: #{tpu_custom_call.1} parent=1 // loop_header_branch
      %41 = sbr.rel (%p39) target = $region8
    $region5: #{tpu_custom_call.1} parent=1 // loop_body
      %s43 = ssub.s32 %s38, 1
      %s44 = ssub.s32 %s38, 2
      %s51 = sadd.s32 1, %s46
      %p52 = scmp.ge.s32.totalorder %s51, 2
      %s53 = scalar_select %p52, 0, %s51
      %s54 = sadd.s32 1, %s45
      %s55 = scalar_select %p52, %s54, %s45
      %p56 = scmp.ge.s32.totalorder %s55, 2
      %s57 = scalar_select %p56, 0, %s55
      %s58 = ssub.s32 %s45, %s57
      %p59 = scmp.eq.s32.totalorder %s58, 0
      %s61 = sadd.s32 %s60, 1
      %s62 = scalar_select %p59, %s60, %s61
      %p65 = pneg %p59
      %p66 = scmp.eq.s32.totalorder %s38, 3
      %p67 = por %p65, %p66
      %p68 = scmp.ne.s32.totalorder %s60, %s63
      %p69 = scmp.eq.s32.totalorder %s38, 0
      %p70 = por %p68, %p69
      %p71 = scmp.ne.s32.totalorder %s60, %s63
      %p72 = scmp.eq.s32.totalorder %s43, 3
      %p73 = por %p71, %p72
      %p74 = scmp.ne.s32.totalorder %s63, %s64
      %p75 = scmp.eq.s32.totalorder %s43, 0
      %p76 = por %p74, %p75
      %p77 = scmp.ne.s32.totalorder %s63, %s64
      %p78 = scmp.eq.s32.totalorder %s44, 3
      %p79 = por %p77, %p78
      %p81 = scmp.ne.s32.totalorder %s64, %s80
      %p82 = scmp.eq.s32.totalorder %s44, 0
      %p83 = por %p81, %p82
      %s84 = ssub.s32 %s45, %s57
      %p85 = scmp.eq.s32.totalorder %s84, 0
      %s87 = sadd.s32 %s86, 1
      %s88 = scalar_select %p85, %s86, %s87
      %p91 = pneg %p85
      %p92 = scmp.eq.s32.totalorder %s38, 3
      %p93 = por %p91, %p92
      %p94 = scmp.ne.s32.totalorder %s86, %s89
      %p95 = scmp.eq.s32.totalorder %s38, 0
      %p96 = por %p94, %p95
      %p97 = scmp.ne.s32.totalorder %s86, %s89
      %p98 = scmp.eq.s32.totalorder %s43, 3
      %p99 = por %p97, %p98
      %p100 = scmp.ne.s32.totalorder %s89, %s90
      %p101 = scmp.eq.s32.totalorder %s43, 0
      %p102 = por %p100, %p101
      %p103 = scmp.ne.s32.totalorder %s89, %s90
      %p104 = scmp.eq.s32.totalorder %s44, 3
      %p105 = por %p103, %p104
      %p107 = scmp.ne.s32.totalorder %s90, %s106
      %p108 = scmp.eq.s32.totalorder %s44, 0
      %p109 = por %p107, %p108
      %s110 = ssub.s32 %s46, %s53
      %p111 = scmp.eq.s32.totalorder %s110, 0
      %s113 = sadd.s32 %s112, 1
      %s114 = scalar_select %p111, %s112, %s113
      %p117 = pneg %p111
      %p118 = scmp.eq.s32.totalorder %s38, 3
      %p119 = por %p117, %p118
      %p120 = scmp.ne.s32.totalorder %s112, %s115
      %p121 = scmp.eq.s32.totalorder %s38, 0
      %p122 = por %p120, %p121
      %p123 = scmp.ne.s32.totalorder %s112, %s115
      %p124 = scmp.eq.s32.totalorder %s43, 3
      %p125 = por %p123, %p124
      %p126 = scmp.ne.s32.totalorder %s115, %s116
      %p127 = scmp.eq.s32.totalorder %s43, 0
      %p128 = por %p126, %p127
      %p129 = scmp.ne.s32.totalorder %s115, %s116
      %p130 = scmp.eq.s32.totalorder %s44, 3
      %p131 = por %p129, %p130
      %p133 = scmp.ne.s32.totalorder %s116, %s132
      %p134 = scmp.eq.s32.totalorder %s44, 0
      %p135 = por %p133, %p134
      %s136 = ssub.s32 %s46, %s53
      %p137 = scmp.eq.s32.totalorder %s136, 0
      %s139 = sadd.s32 %s138, 1
      %s140 = scalar_select %p137, %s138, %s139
      %p143 = pneg %p137
      %p144 = scmp.eq.s32.totalorder %s38, 3
      %p145 = por %p143, %p144
      %p146 = scmp.ne.s32.totalorder %s138, %s141
      %p147 = scmp.eq.s32.totalorder %s38, 0
      %p148 = por %p146, %p147
      %p149 = scmp.ne.s32.totalorder %s138, %s141
      %p150 = scmp.eq.s32.totalorder %s43, 3
      %p151 = por %p149, %p150
      %p152 = scmp.ne.s32.totalorder %s141, %s142
      %p153 = scmp.eq.s32.totalorder %s43, 0
      %p154 = por %p152, %p153
      %p155 = scmp.ne.s32.totalorder %s141, %s142
      %p156 = scmp.eq.s32.totalorder %s44, 3
      %p157 = por %p155, %p156
      %p159 = scmp.ne.s32.totalorder %s142, %s158
      %p160 = scmp.eq.s32.totalorder %s44, 0
      %p161 = por %p159, %p160
      %s162 = ssub.s32 %s46, %s53
      %p163 = scmp.eq.s32.totalorder %s162, 0
      %s165 = sadd.s32 %s164, 1
      %s166 = scalar_select %p163, %s164, %s165
      %p169 = pneg %p163
      %p170 = scmp.eq.s32.totalorder %s38, 3
      %p171 = por %p169, %p170
      %p172 = scmp.ne.s32.totalorder %s164, %s167
      %p173 = scmp.eq.s32.totalorder %s38, 0
      %p174 = por %p172, %p173
      %p175 = scmp.ne.s32.totalorder %s164, %s167
      %p176 = scmp.eq.s32.totalorder %s43, 3
      %p177 = por %p175, %p176
      %p178 = scmp.ne.s32.totalorder %s167, %s168
      %p179 = scmp.eq.s32.totalorder %s43, 0
      %p180 = por %p178, %p179
      %p181 = scmp.ne.s32.totalorder %s167, %s168
      %p182 = scmp.eq.s32.totalorder %s44, 3
      %p183 = por %p181, %p182
      %p185 = scmp.ne.s32.totalorder %s168, %s184
      %p186 = scmp.eq.s32.totalorder %s44, 0
      %p187 = por %p185, %p186
      %s188 = ssub.s32 %s46, %s53
      %p189 = scmp.eq.s32.totalorder %s188, 0
      %s191 = sadd.s32 %s190, 1
      %s192 = scalar_select %p189, %s190, %s191
      %p195 = pneg %p189
      %p196 = scmp.eq.s32.totalorder %s38, 3
      %p197 = por %p195, %p196
      %p198 = scmp.ne.s32.totalorder %s190, %s193
      %p199 = scmp.eq.s32.totalorder %s38, 0
      %p200 = por %p198, %p199
      %p201 = scmp.ne.s32.totalorder %s190, %s193
      %p202 = scmp.eq.s32.totalorder %s43, 3
      %p203 = por %p201, %p202
      %p204 = scmp.ne.s32.totalorder %s193, %s194
      %p205 = scmp.eq.s32.totalorder %s43, 0
      %p206 = por %p204, %p205
      %p207 = scmp.ne.s32.totalorder %s193, %s194
      %p208 = scmp.eq.s32.totalorder %s44, 3
      %p209 = por %p207, %p208
      %p211 = scmp.ne.s32.totalorder %s194, %s210
      %p212 = scmp.eq.s32.totalorder %s44, 0
      %p213 = por %p211, %p212
      %s214 = ssub.s32 %s46, %s53
      %p215 = scmp.eq.s32.totalorder %s214, 0
      %s217 = sadd.s32 %s216, 1
      %s218 = scalar_select %p215, %s216, %s217
      %p221 = pneg %p215
      %p222 = scmp.eq.s32.totalorder %s38, 3
      %p223 = por %p221, %p222
      %p224 = scmp.ne.s32.totalorder %s216, %s219
      %p225 = scmp.eq.s32.totalorder %s38, 0
      %p226 = por %p224, %p225
      %p227 = scmp.ne.s32.totalorder %s216, %s219
      %p228 = scmp.eq.s32.totalorder %s43, 3
      %p229 = por %p227, %p228
      %p230 = scmp.ne.s32.totalorder %s219, %s220
      %p231 = scmp.eq.s32.totalorder %s43, 0
      %p232 = por %p230, %p231
      %p233 = scmp.ne.s32.totalorder %s219, %s220
      %p234 = scmp.eq.s32.totalorder %s44, 3
      %p235 = por %p233, %p234
      %p237 = scmp.ne.s32.totalorder %s220, %s236
      %p238 = scmp.eq.s32.totalorder %s44, 0
      %p239 = por %p237, %p238
      %s240 = ssub.s32 %s46, %s53
      %p241 = scmp.eq.s32.totalorder %s240, 0
      %s243 = sadd.s32 %s242, 1
      %s244 = scalar_select %p241, %s242, %s243
      %p247 = pneg %p241
      %p248 = scmp.eq.s32.totalorder %s38, 3
      %p249 = por %p247, %p248
      %p250 = scmp.ne.s32.totalorder %s242, %s245
      %p251 = scmp.eq.s32.totalorder %s38, 0
      %p252 = por %p250, %p251
      %p253 = scmp.ne.s32.totalorder %s242, %s245
      %p254 = scmp.eq.s32.totalorder %s43, 3
      %p255 = por %p253, %p254
      %p256 = scmp.ne.s32.totalorder %s245, %s246
      %p257 = scmp.eq.s32.totalorder %s43, 0
      %p258 = por %p256, %p257
      %p259 = scmp.ne.s32.totalorder %s245, %s246
      %p260 = scmp.eq.s32.totalorder %s44, 3
      %p261 = por %p259, %p260
      %p263 = scmp.ne.s32.totalorder %s246, %s262
      %p264 = scmp.eq.s32.totalorder %s44, 0
      %p265 = por %p263, %p264
      %s266 = ssub.s32 %s46, %s53
      %p267 = scmp.eq.s32.totalorder %s266, 0
      %s269 = sadd.s32 %s268, 1
      %s270 = scalar_select %p267, %s268, %s269
      %p273 = pneg %p267
      %p274 = scmp.eq.s32.totalorder %s38, 3
      %p275 = por %p273, %p274
      %p276 = scmp.ne.s32.totalorder %s268, %s271
      %p277 = scmp.eq.s32.totalorder %s38, 0
      %p278 = por %p276, %p277
      %p279 = scmp.ne.s32.totalorder %s268, %s271
      %p280 = scmp.eq.s32.totalorder %s43, 3
      %p281 = por %p279, %p280
      %p282 = scmp.ne.s32.totalorder %s271, %s272
      %p283 = scmp.eq.s32.totalorder %s43, 0
      %p284 = por %p282, %p283
      %p285 = scmp.ne.s32.totalorder %s271, %s272
      %p286 = scmp.eq.s32.totalorder %s44, 3
      %p287 = por %p285, %p286
      %p289 = scmp.ne.s32.totalorder %s272, %s288
      %p290 = scmp.eq.s32.totalorder %s44, 0
      %p291 = por %p289, %p290
      %s292 = ssub.s32 %s46, %s53
      %p293 = scmp.eq.s32.totalorder %s292, 0
      %s295 = sadd.s32 %s294, 1
      %s296 = scalar_select %p293, %s294, %s295
      %p299 = pneg %p293
      %p300 = scmp.eq.s32.totalorder %s38, 3
      %p301 = por %p299, %p300
      %p302 = scmp.ne.s32.totalorder %s294, %s297
      %p303 = scmp.eq.s32.totalorder %s38, 0
      %p304 = por %p302, %p303
      %p305 = scmp.ne.s32.totalorder %s294, %s297
      %p306 = scmp.eq.s32.totalorder %s43, 3
      %p307 = por %p305, %p306
      %p308 = scmp.ne.s32.totalorder %s297, %s298
      %p309 = scmp.eq.s32.totalorder %s43, 0
      %p310 = por %p308, %p309
      %p311 = scmp.ne.s32.totalorder %s297, %s298
      %p312 = scmp.eq.s32.totalorder %s44, 3
      %p313 = por %p311, %p312
      %p315 = scmp.ne.s32.totalorder %s298, %s314
      %p316 = scmp.eq.s32.totalorder %s44, 0
      %p317 = por %p315, %p316
      %s318 = ssub.s32 %s46, %s53
      %p319 = scmp.eq.s32.totalorder %s318, 0
      %s321 = sadd.s32 %s320, 1
      %s322 = scalar_select %p319, %s320, %s321
      %p325 = pneg %p319
      %p326 = scmp.eq.s32.totalorder %s38, 3
      %p327 = por %p325, %p326
      %p328 = scmp.ne.s32.totalorder %s320, %s323
      %p329 = scmp.eq.s32.totalorder %s38, 0
      %p330 = por %p328, %p329
      %p331 = scmp.ne.s32.totalorder %s320, %s323
      %p332 = scmp.eq.s32.totalorder %s43, 3
      %p333 = por %p331, %p332
      %p334 = scmp.ne.s32.totalorder %s323, %s324
      %p335 = scmp.eq.s32.totalorder %s43, 0
      %p336 = por %p334, %p335
      %p337 = scmp.ne.s32.totalorder %s323, %s324
      %p338 = scmp.eq.s32.totalorder %s44, 3
      %p339 = por %p337, %p338
      %p341 = scmp.ne.s32.totalorder %s324, %s340
      %p342 = scmp.eq.s32.totalorder %s44, 0
      %p343 = por %p341, %p342
      %s344 = ssub.s32 %s46, %s53
      %p345 = scmp.eq.s32.totalorder %s344, 0
      %s347 = sadd.s32 %s346, 1
      %s348 = scalar_select %p345, %s346, %s347
      %p351 = pneg %p345
      %p352 = scmp.eq.s32.totalorder %s38, 3
      %p353 = por %p351, %p352
      %p354 = scmp.ne.s32.totalorder %s346, %s349
      %p355 = scmp.eq.s32.totalorder %s38, 0
      %p356 = por %p354, %p355
      %p357 = scmp.ne.s32.totalorder %s346, %s349
      %p358 = scmp.eq.s32.totalorder %s43, 3
      %p359 = por %p357, %p358
      %p360 = scmp.ne.s32.totalorder %s349, %s350
      %p361 = scmp.eq.s32.totalorder %s43, 0
      %p362 = por %p360, %p361
      %p363 = scmp.ne.s32.totalorder %s349, %s350
      %p364 = scmp.eq.s32.totalorder %s44, 3
      %p365 = por %p363, %p364
      %p367 = scmp.ne.s32.totalorder %s350, %s366
      %p368 = scmp.eq.s32.totalorder %s44, 0
      %p369 = por %p367, %p368
      %s370 = ssub.s32 %s46, %s53
      %p371 = scmp.eq.s32.totalorder %s370, 0
      %s373 = sadd.s32 %s372, 1
      %s374 = scalar_select %p371, %s372, %s373
      %p377 = pneg %p371
      %p378 = scmp.eq.s32.totalorder %s38, 3
      %p379 = por %p377, %p378
      %p380 = scmp.ne.s32.totalorder %s372, %s375
      %p381 = scmp.eq.s32.totalorder %s38, 0
      %p382 = por %p380, %p381
      %p383 = scmp.ne.s32.totalorder %s372, %s375
      %p384 = scmp.eq.s32.totalorder %s43, 3
      %p385 = por %p383, %p384
      %p386 = scmp.ne.s32.totalorder %s375, %s376
      %p387 = scmp.eq.s32.totalorder %s43, 0
      %p388 = por %p386, %p387
      %p389 = scmp.ne.s32.totalorder %s375, %s376
      %p390 = scmp.eq.s32.totalorder %s44, 3
      %p391 = por %p389, %p390
      %p393 = scmp.ne.s32.totalorder %s376, %s392
      %p394 = scmp.eq.s32.totalorder %s44, 0
      %p395 = por %p393, %p394
      %s396 = ssub.s32 %s46, %s53
      %p397 = scmp.eq.s32.totalorder %s396, 0
      %s399 = sadd.s32 %s398, 1
      %s400 = scalar_select %p397, %s398, %s399
      %p403 = pneg %p397
      %p404 = scmp.eq.s32.totalorder %s38, 3
      %p405 = por %p403, %p404
      %p406 = scmp.ne.s32.totalorder %s398, %s401
      %p407 = scmp.eq.s32.totalorder %s38, 0
      %p408 = por %p406, %p407
      %p409 = scmp.ne.s32.totalorder %s398, %s401
      %p410 = scmp.eq.s32.totalorder %s43, 3
      %p411 = por %p409, %p410
      %p412 = scmp.ne.s32.totalorder %s401, %s402
      %p413 = scmp.eq.s32.totalorder %s43, 0
      %p414 = por %p412, %p413
      %p415 = scmp.ne.s32.totalorder %s401, %s402
      %p416 = scmp.eq.s32.totalorder %s44, 3
      %p417 = por %p415, %p416
      %p419 = scmp.ne.s32.totalorder %s402, %s418
      %p420 = scmp.eq.s32.totalorder %s44, 0
      %p421 = por %p419, %p420
      %s422 = ssub.s32 %s46, %s53
      %p423 = scmp.eq.s32.totalorder %s422, 0
      %s425 = sadd.s32 %s424, 1
      %s426 = scalar_select %p423, %s424, %s425
      %p429 = pneg %p423
      %p430 = scmp.eq.s32.totalorder %s38, 3
      %p431 = por %p429, %p430
      %p432 = scmp.ne.s32.totalorder %s424, %s427
      %p433 = scmp.eq.s32.totalorder %s38, 0
      %p434 = por %p432, %p433
      %p435 = scmp.ne.s32.totalorder %s424, %s427
      %p436 = scmp.eq.s32.totalorder %s43, 3
      %p437 = por %p435, %p436
      %p438 = scmp.ne.s32.totalorder %s427, %s428
      %p439 = scmp.eq.s32.totalorder %s43, 0
      %p440 = por %p438, %p439
      %p441 = scmp.ne.s32.totalorder %s427, %s428
      %p442 = scmp.eq.s32.totalorder %s44, 3
      %p443 = por %p441, %p442
      %p445 = scmp.ne.s32.totalorder %s428, %s444
      %p446 = scmp.eq.s32.totalorder %s44, 0
      %p447 = por %p445, %p446
      %s448 = ssub.s32 %s46, %s53
      %p449 = scmp.eq.s32.totalorder %s448, 0
      %s451 = sadd.s32 %s450, 1
      %s452 = scalar_select %p449, %s450, %s451
      %p455 = pneg %p449
      %p456 = scmp.eq.s32.totalorder %s38, 3
      %p457 = por %p455, %p456
      %p458 = scmp.ne.s32.totalorder %s450, %s453
      %p459 = scmp.eq.s32.totalorder %s38, 0
      %p460 = por %p458, %p459
      %p461 = scmp.ne.s32.totalorder %s450, %s453
      %p462 = scmp.eq.s32.totalorder %s43, 3
      %p463 = por %p461, %p462
      %p464 = scmp.ne.s32.totalorder %s453, %s454
      %p465 = scmp.eq.s32.totalorder %s43, 0
      %p466 = por %p464, %p465
      %p467 = scmp.ne.s32.totalorder %s453, %s454
      %p468 = scmp.eq.s32.totalorder %s44, 3
      %p469 = por %p467, %p468
      %p471 = scmp.ne.s32.totalorder %s454, %s470
      %p472 = scmp.eq.s32.totalorder %s44, 0
      %p473 = por %p471, %p472
      %s474 = ssub.s32 %s46, %s53
      %p475 = scmp.eq.s32.totalorder %s474, 0
      %s477 = sadd.s32 %s476, 1
      %s478 = scalar_select %p475, %s476, %s477
      %p481 = pneg %p475
      %p482 = scmp.eq.s32.totalorder %s38, 3
      %p483 = por %p481, %p482
      %p484 = scmp.ne.s32.totalorder %s476, %s479
      %p485 = scmp.eq.s32.totalorder %s38, 0
      %p486 = por %p484, %p485
      %p487 = scmp.ne.s32.totalorder %s476, %s479
      %p488 = scmp.eq.s32.totalorder %s43, 3
      %p489 = por %p487, %p488
      %p490 = scmp.ne.s32.totalorder %s479, %s480
      %p491 = scmp.eq.s32.totalorder %s43, 0
      %p492 = por %p490, %p491
      %p493 = scmp.ne.s32.totalorder %s479, %s480
      %p494 = scmp.eq.s32.totalorder %s44, 3
      %p495 = por %p493, %p494
      %p497 = scmp.ne.s32.totalorder %s480, %s496
      %p498 = scmp.eq.s32.totalorder %s44, 0
      %p499 = por %p497, %p498
      %s500 = ssub.s32 %s46, %s53
      %p501 = scmp.eq.s32.totalorder %s500, 0
      %s503 = sadd.s32 %s502, 1
      %s504 = scalar_select %p501, %s502, %s503
      %p507 = pneg %p501
      %p508 = scmp.eq.s32.totalorder %s38, 3
      %p509 = por %p507, %p508
      %p510 = scmp.ne.s32.totalorder %s502, %s505
      %p511 = scmp.eq.s32.totalorder %s38, 0
      %p512 = por %p510, %p511
      %p513 = scmp.ne.s32.totalorder %s502, %s505
      %p514 = scmp.eq.s32.totalorder %s43, 3
      %p515 = por %p513, %p514
      %p516 = scmp.ne.s32.totalorder %s505, %s506
      %p517 = scmp.eq.s32.totalorder %s43, 0
      %p518 = por %p516, %p517
      %p519 = scmp.ne.s32.totalorder %s505, %s506
      %p520 = scmp.eq.s32.totalorder %s44, 3
      %p521 = por %p519, %p520
      %p523 = scmp.ne.s32.totalorder %s506, %s522
      %p524 = scmp.eq.s32.totalorder %s44, 0
      %p525 = por %p523, %p524
      %s527 = sadd.s32 %s526, 1
      %p530 = scmp.eq.s32.totalorder %s38, 3
      %p531 = scmp.ne.s32.totalorder %s526, %s528
      %p532 = scmp.eq.s32.totalorder %s38, 0
      %p533 = por %p531, %p532
      %p534 = scmp.ne.s32.totalorder %s526, %s528
      %p535 = scmp.eq.s32.totalorder %s43, 3
      %p536 = por %p534, %p535
      %p537 = scmp.ne.s32.totalorder %s528, %s529
      %p538 = scmp.eq.s32.totalorder %s43, 0
      %p539 = por %p537, %p538
      %p540 = scmp.ne.s32.totalorder %s528, %s529
      %p541 = scmp.eq.s32.totalorder %s44, 3
      %p542 = por %p540, %p541
      %p544 = scmp.ne.s32.totalorder %s529, %s543
      %p545 = scmp.eq.s32.totalorder %s44, 0
      %p546 = por %p544, %p545
      %s548 = sadd.s32 %s547, 1
      %p551 = scmp.eq.s32.totalorder %s38, 3
      %p552 = scmp.ne.s32.totalorder %s547, %s549
      %p553 = scmp.eq.s32.totalorder %s38, 0
      %p554 = por %p552, %p553
      %p555 = scmp.ne.s32.totalorder %s547, %s549
      %p556 = scmp.eq.s32.totalorder %s43, 3
      %p557 = por %p555, %p556
      %p558 = scmp.ne.s32.totalorder %s549, %s550
      %p559 = scmp.eq.s32.totalorder %s43, 0
      %p560 = por %p558, %p559
      %p561 = scmp.ne.s32.totalorder %s549, %s550
      %p562 = scmp.eq.s32.totalorder %s44, 3
      %p563 = por %p561, %p562
      %p565 = scmp.ne.s32.totalorder %s550, %s564
      %p566 = scmp.eq.s32.totalorder %s44, 0
      %p567 = por %p565, %p566
      %s568 = ssub.s32 %s45, %s57
      %p569 = scmp.eq.s32.totalorder %s568, 0
      %s571 = sadd.s32 %s570, 1
      %s572 = scalar_select %p569, %s570, %s571
      %p575 = pneg %p569
      %p576 = scmp.eq.s32.totalorder %s38, 3
      %p577 = por %p575, %p576
      %p578 = scmp.ne.s32.totalorder %s570, %s573
      %p579 = scmp.eq.s32.totalorder %s38, 0
      %p580 = por %p578, %p579
      %p581 = scmp.ne.s32.totalorder %s570, %s573
      %p582 = scmp.eq.s32.totalorder %s43, 3
      %p583 = por %p581, %p582
      %p584 = scmp.ne.s32.totalorder %s573, %s574
      %p585 = scmp.eq.s32.totalorder %s43, 0
      %p586 = por %p584, %p585
      %p587 = scmp.ne.s32.totalorder %s573, %s574
      %p588 = scmp.eq.s32.totalorder %s44, 3
      %p589 = por %p587, %p588
      %p591 = scmp.ne.s32.totalorder %s574, %s590
      %p592 = scmp.eq.s32.totalorder %s44, 0
      %p593 = por %p591, %p592
      %p594 = scmp.le.s32.totalorder 1, %s38
      %p595 = scmp.lt.s32.totalorder %s38, 5
      %p596 = pnand %p594, %p595
      %p597 = pneg %p596
      // Predicated region
      $region9: #{tpu_custom_call.1} parent=5 // pred_check
        _
      $region10: #{tpu_custom_call.1} parent=5 // pred_check_branch
        %599 = sbr.rel (%p596) target = $region12
      $region11: #{tpu_custom_call.1} parent=5 // pred_region
        %s600 = ssub.s32 %s38, 1
        // Predicated region
        $region13: #{tpu_custom_call.1} parent=11 // pred_check
          %p601 = pneg %p539
        $region14: #{tpu_custom_call.1} parent=11 // pred_check_branch
          %603 = sbr.rel (%p601) target = $region16
        $region15: #{tpu_custom_call.1} parent=11 // pred_region
          _
        $region16: #{tpu_custom_call.1} parent=11 // pred_fallthru
          _
        // Predicated region
        $region17: #{tpu_custom_call.1} parent=11 // pred_check
          %p604 = pneg %p560
        $region18: #{tpu_custom_call.1} parent=11 // pred_check_branch
          %606 = sbr.rel (%p604) target = $region20
        $region19: #{tpu_custom_call.1} parent=11 // pred_region
          _
        $region20: #{tpu_custom_call.1} parent=11 // pred_fallthru
          _
      $region12: #{tpu_custom_call.1} parent=5 // pred_fallthru
        _
      %p607 = scmp.lt.s32.totalorder %s38, 4
      // Predicated region
      $region21: #{tpu_custom_call.1} parent=5 // pred_check
        %p608 = pneg %p607
      $region22: #{tpu_custom_call.1} parent=5 // pred_check_branch
        %610 = sbr.rel (%p608) target = $region24
      $region23: #{tpu_custom_call.1} parent=5 // pred_region
        // Predicated region
        $region25: #{tpu_custom_call.1} parent=23 // pred_check
          %p611 = pneg %p70
        $region26: #{tpu_custom_call.1} parent=23 // pred_check_branch
          %613 = sbr.rel (%p611) target = $region28
        $region27: #{tpu_custom_call.1} parent=23 // pred_region
          %s614 = sand.u32 %s60, 1
          %s615 = scalar_lea.sflag [#allocation6], %s614
          %s616 = sand.u32 %s60, 1
          %s617 = smul.addr %s616, 8
          %s618 = scalar_lea.vmem [#allocation5], %s617
          %s620 = ssub.s32 128, 128
          %621 = vsyncadd %s615, %s620
          %s622 = smul.addr %s45, 128
          %s623 = scalar_lea.hbm %s0, %s622
          %s625 = sshll.u32 %s618, 4
          %s626 = int_to_ptr.vmem [resolvable:$true] %s625
          %628 = dma.hbm_to_vmem [thread:$0]  %s623, 128, %s626, %s615
        $region28: #{tpu_custom_call.1} parent=23 // pred_fallthru
          _
        // Predicated region
        $region29: #{tpu_custom_call.1} parent=23 // pred_check
          %p629 = pneg %p96
        $region30: #{tpu_custom_call.1} parent=23 // pred_check_branch
          %631 = sbr.rel (%p629) target = $region32
        $region31: #{tpu_custom_call.1} parent=23 // pred_region
          %s632 = sand.u32 %s38, 1
          %s633 = scalar_lea.sflag [#allocation9], %s632
          %s634 = sand.u32 %s86, 1
          %s635 = smul.addr %s634, 8
          %s636 = scalar_lea.vmem [#allocation8], %s635
          %s638 = ssub.s32 128, 128
          %639 = vsyncadd %s633, %s638
          %s640 = smul.addr %s45, 128
          %s641 = scalar_lea.hbm %s1, %s640
          %s643 = sshll.u32 %s636, 4
          %s644 = int_to_ptr.vmem [resolvable:$true] %s643
          %646 = dma.hbm_to_vmem [thread:$0]  %s641, 128, %s644, %s633
        $region32: #{tpu_custom_call.1} parent=23 // pred_fallthru
          _
        // Predicated region
        $region33: #{tpu_custom_call.1} parent=23 // pred_check
          %p647 = pneg %p122
        $region34: #{tpu_custom_call.1} parent=23 // pred_check_branch
          %649 = sbr.rel (%p647) target = $region36
        $region35: #{tpu_custom_call.1} parent=23 // pred_region
          %p650 = scmp.lt.s32.totalorder %s46, 1
          %s651 = scalar_select %p650, %s46, 1
          %s652 = smul.addr %s651, 4
          %s653 = smul.addr %s652, 4
          %s654 = scalar_lea.vmem %s2, %s653
        $region36: #{tpu_custom_call.1} parent=23 // pred_fallthru
          _
        // Predicated region
        $region37: #{tpu_custom_call.1} parent=23 // pred_check
          %p655 = pneg %p148
        $region38: #{tpu_custom_call.1} parent=23 // pred_check_branch
          %657 = sbr.rel (%p655) target = $region40
        $region39: #{tpu_custom_call.1} parent=23 // pred_region
          %p658 = scmp.lt.s32.totalorder %s46, 1
          %s659 = scalar_select %p658, %s46, 1
          %s660 = smul.addr %s659, 4
          %s661 = smul.addr %s660, 4
          %s662 = scalar_lea.vmem %s3, %s661
        $region40: #{tpu_custom_call.1} parent=23 // pred_fallthru
          _
        // Predicated region
        $region41: #{tpu_custom_call.1} parent=23 // pred_check
          %p663 = pneg %p174
        $region42: #{tpu_custom_call.1} parent=23 // pred_check_branch
          %665 = sbr.rel (%p663) target = $region44
        $region43: #{tpu_custom_call.1} parent=23 // pred_region
          %p666 = scmp.lt.s32.totalorder %s46, 1
          %s667 = scalar_select %p666, %s46, 1
          %s668 = smul.addr %s667, 4
          %s669 = smul.addr %s668, 4
          %s670 = scalar_lea.vmem %s4, %s669
        $region44: #{tpu_custom_call.1} parent=23 // pred_fallthru
          _
        // Predicated region
        $region45: #{tpu_custom_call.1} parent=23 // pred_check
          %p671 = pneg %p200
        $region46: #{tpu_custom_call.1} parent=23 // pred_check_branch
          %673 = sbr.rel (%p671) target = $region48
        $region47: #{tpu_custom_call.1} parent=23 // pred_region
          %s674 = sand.u32 %s38, 1
          %s675 = scalar_lea.sflag [#allocation9], %s674
          %s676 = sand.u32 %s190, 1
          %s677 = smul.addr %s676, 16
          %s678 = scalar_lea.vmem [#allocation10], %s677
          %s680 = ssub.s32 256, 256
          %681 = vsyncadd %s675, %s680
          %s682 = smul.addr %s46, 4
          %s683 = smul.addr %s682, 64
          %s684 = scalar_lea.hbm %s5, %s683
          %s685 = sshll.u32 %s678, 4
          %s686 = int_to_ptr.vmem [resolvable:$true] %s685
          %691 = dma.hbm_to_vmem [thread:$0]  %s684, 256, %s686, %s675, 64, 64, 4
        $region48: #{tpu_custom_call.1} parent=23 // pred_fallthru
          _
        // Predicated region
        $region49: #{tpu_custom_call.1} parent=23 // pred_check
          %p692 = pneg %p226
        $region50: #{tpu_custom_call.1} parent=23 // pred_check_branch
          %694 = sbr.rel (%p692) target = $region52
        $region51: #{tpu_custom_call.1} parent=23 // pred_region
          %p695 = scmp.lt.s32.totalorder %s46, 1
          %s696 = scalar_select %p695, %s46, 1
          %s697 = scalar_lea.vmem %s6, %s696
        $region52: #{tpu_custom_call.1} parent=23 // pred_fallthru
          _
        // Predicated region
        $region53: #{tpu_custom_call.1} parent=23 // pred_check
          %p698 = pneg %p252
        $region54: #{tpu_custom_call.1} parent=23 // pred_check_branch
          %700 = sbr.rel (%p698) target = $region56
        $region55: #{tpu_custom_call.1} parent=23 // pred_region
          %p701 = scmp.lt.s32.totalorder %s46, 1
          %s702 = scalar_select %p701, %s46, 1
          %s703 = scalar_lea.vmem %s7, %s702
        $region56: #{tpu_custom_call.1} parent=23 // pred_fallthru
          _
        // Predicated region
        $region57: #{tpu_custom_call.1} parent=23 // pred_check
          %p704 = pneg %p278
        $region58: #{tpu_custom_call.1} parent=23 // pred_check_branch
          %706 = sbr.rel (%p704) target = $region60
        $region59: #{tpu_custom_call.1} parent=23 // pred_region
          %p707 = scmp.lt.s32.totalorder %s46, 1
          %s708 = scalar_select %p707, %s46, 1
          %s709 = scalar_lea.vmem %s8, %s708
        $region60: #{tpu_custom_call.1} parent=23 // pred_fallthru
          _
        // Predicated region
        $region61: #{tpu_custom_call.1} parent=23 // pred_check
          %p710 = pneg %p304
        $region62: #{tpu_custom_call.1} parent=23 // pred_check_branch
          %712 = sbr.rel (%p710) target = $region64
        $region63: #{tpu_custom_call.1} parent=23 // pred_region
          %p713 = scmp.lt.s32.totalorder %s46, 1
          %s714 = scalar_select %p713, %s46, 1
          %s715 = scalar_lea.vmem %s9, %s714
        $region64: #{tpu_custom_call.1} parent=23 // pred_fallthru
          _
        // Predicated region
        $region65: #{tpu_custom_call.1} parent=23 // pred_check
          %p716 = pneg %p330
        $region66: #{tpu_custom_call.1} parent=23 // pred_check_branch
          %718 = sbr.rel (%p716) target = $region68
        $region67: #{tpu_custom_call.1} parent=23 // pred_region
          %p719 = scmp.lt.s32.totalorder %s46, 1
          %s720 = scalar_select %p719, %s46, 1
          %s721 = scalar_lea.vmem %s10, %s720
        $region68: #{tpu_custom_call.1} parent=23 // pred_fallthru
          _
        // Predicated region
        $region69: #{tpu_custom_call.1} parent=23 // pred_check
          %p722 = pneg %p356
        $region70: #{tpu_custom_call.1} parent=23 // pred_check_branch
          %724 = sbr.rel (%p722) target = $region72
        $region71: #{tpu_custom_call.1} parent=23 // pred_region
          %p725 = scmp.lt.s32.totalorder %s46, 1
          %s726 = scalar_select %p725, %s46, 1
          %s727 = scalar_lea.vmem %s11, %s726
        $region72: #{tpu_custom_call.1} parent=23 // pred_fallthru
          _
        // Predicated region
        $region73: #{tpu_custom_call.1} parent=23 // pred_check
          %p728 = pneg %p382
        $region74: #{tpu_custom_call.1} parent=23 // pred_check_branch
          %730 = sbr.rel (%p728) target = $region76
        $region75: #{tpu_custom_call.1} parent=23 // pred_region
          %p731 = scmp.lt.s32.totalorder %s46, 1
          %s732 = scalar_select %p731, %s46, 1
          %s733 = scalar_lea.vmem %s12, %s732
        $region76: #{tpu_custom_call.1} parent=23 // pred_fallthru
          _
        // Predicated region
        $region77: #{tpu_custom_call.1} parent=23 // pred_check
          %p734 = pneg %p408
        $region78: #{tpu_custom_call.1} parent=23 // pred_check_branch
          %736 = sbr.rel (%p734) target = $region80
        $region79: #{tpu_custom_call.1} parent=23 // pred_region
          %p737 = scmp.lt.s32.totalorder %s46, 1
          %s738 = scalar_select %p737, %s46, 1
          %s739 = scalar_lea.vmem %s13, %s738
        $region80: #{tpu_custom_call.1} parent=23 // pred_fallthru
          _
        // Predicated region
        $region81: #{tpu_custom_call.1} parent=23 // pred_check
          %p740 = pneg %p434
        $region82: #{tpu_custom_call.1} parent=23 // pred_check_branch
          %742 = sbr.rel (%p740) target = $region84
        $region83: #{tpu_custom_call.1} parent=23 // pred_region
          %s743 = sand.u32 %s424, 1
          %s744 = scalar_lea.sflag [#allocation12], %s743
          %s745 = sand.u32 %s424, 1
          %s746 = smul.addr %s745, 16
          %s747 = scalar_lea.vmem [#allocation11], %s746
          %s749 = ssub.s32 256, 256
          %750 = vsyncadd %s744, %s749
          %s751 = smul.addr %s46, 4
          %s752 = smul.addr %s751, 64
          %s753 = scalar_lea.hbm %s14, %s752
          %s754 = sshll.u32 %s747, 4
          %s755 = int_to_ptr.vmem [resolvable:$true] %s754
          %760 = dma.hbm_to_vmem [thread:$0]  %s753, 256, %s755, %s744, 64, 64, 4
        $region84: #{tpu_custom_call.1} parent=23 // pred_fallthru
          _
        // Predicated region
        $region85: #{tpu_custom_call.1} parent=23 // pred_check
          %p761 = pneg %p460
        $region86: #{tpu_custom_call.1} parent=23 // pred_check_branch
          %763 = sbr.rel (%p761) target = $region88
        $region87: #{tpu_custom_call.1} parent=23 // pred_region
          %p764 = scmp.lt.s32.totalorder %s46, 1
          %s765 = scalar_select %p764, %s46, 1
          %s766 = scalar_lea.vmem %s15, %s765
        $region88: #{tpu_custom_call.1} parent=23 // pred_fallthru
          _
        // Predicated region
        $region89: #{tpu_custom_call.1} parent=23 // pred_check
          %p767 = pneg %p486
        $region90: #{tpu_custom_call.1} parent=23 // pred_check_branch
          %769 = sbr.rel (%p767) target = $region92
        $region91: #{tpu_custom_call.1} parent=23 // pred_region
          %p770 = scmp.lt.s32.totalorder %s46, 1
          %s771 = scalar_select %p770, %s46, 1
          %s772 = smul.addr %s771, 8
          %s773 = smul.addr %s772, 4
          %s774 = scalar_lea.vmem %s16, %s773
        $region92: #{tpu_custom_call.1} parent=23 // pred_fallthru
          _
        // Predicated region
        $region93: #{tpu_custom_call.1} parent=23 // pred_check
          %p775 = pneg %p512
        $region94: #{tpu_custom_call.1} parent=23 // pred_check_branch
          %777 = sbr.rel (%p775) target = $region96
        $region95: #{tpu_custom_call.1} parent=23 // pred_region
          %p778 = scmp.lt.s32.totalorder %s46, 1
          %s779 = scalar_select %p778, %s46, 1
          %s780 = scalar_lea.vmem %s17, %s779
        $region96: #{tpu_custom_call.1} parent=23 // pred_fallthru
          _
      $region24: #{tpu_custom_call.1} parent=5 // pred_fallthru
        _
      %p781 = scmp.le.s32.totalorder 1, %s38
      %p782 = scmp.lt.s32.totalorder %s38, 5
      %p783 = pnand %p781, %p782
      %p784 = pneg %p783
      // Predicated region
      $region97: #{tpu_custom_call.1} parent=5 // pred_check
        _
      $region98: #{tpu_custom_call.1} parent=5 // pred_check_branch
        %786 = sbr.rel (%p783) target = $region100
      $region99: #{tpu_custom_call.1} parent=5 // pred_region
        %s787 = ssub.s32 %s38, 1
        %s788 = sand.u32 %s63, 1
        %s789 = scalar_lea.sflag [#allocation6], %s788
        %s790 = sand.u32 %s63, 1
        %s791 = smul.addr %s790, 8
        %s792 = scalar_lea.vmem [#allocation5], %s791
        // Predicated region
        $region101: #{tpu_custom_call.1} parent=99 // pred_check
          %p793 = pneg %p76
        $region102: #{tpu_custom_call.1} parent=99 // pred_check_branch
          %795 = sbr.rel (%p793) target = $region104
        $region103: #{tpu_custom_call.1} parent=99 // pred_region
          %796 = dma.done %s789, 128
        $region104: #{tpu_custom_call.1} parent=99 // pred_fallthru
          _
        %s797 = sand.u32 %s43, 1
        %s798 = scalar_lea.sflag [#allocation9], %s797
        %s799 = sand.u32 %s89, 1
        %s800 = smul.addr %s799, 8
        %s801 = scalar_lea.vmem [#allocation8], %s800
        // Predicated region
        $region105: #{tpu_custom_call.1} parent=99 // pred_check
          %p802 = pneg %p102
        $region106: #{tpu_custom_call.1} parent=99 // pred_check_branch
          %804 = sbr.rel (%p802) target = $region108
        $region107: #{tpu_custom_call.1} parent=99 // pred_region
          %805 = dma.done %s798, 128
        $region108: #{tpu_custom_call.1} parent=99 // pred_fallthru
          _
        %s806 = sand.u32 %s43, 1
        %s807 = scalar_lea.sflag [#allocation9], %s806
        %s808 = sand.u32 %s193, 1
        %s809 = smul.addr %s808, 16
        %s810 = scalar_lea.vmem [#allocation10], %s809
        // Predicated region
        $region109: #{tpu_custom_call.1} parent=99 // pred_check
          %p811 = pneg %p206
        $region110: #{tpu_custom_call.1} parent=99 // pred_check_branch
          %813 = sbr.rel (%p811) target = $region112
        $region111: #{tpu_custom_call.1} parent=99 // pred_region
          %814 = dma.done %s807, 256
        $region112: #{tpu_custom_call.1} parent=99 // pred_fallthru
          _
        %s815 = sand.u32 %s427, 1
        %s816 = scalar_lea.sflag [#allocation12], %s815
        %s817 = sand.u32 %s427, 1
        %s818 = smul.addr %s817, 16
        %s819 = scalar_lea.vmem [#allocation11], %s818
        // Predicated region
        $region113: #{tpu_custom_call.1} parent=99 // pred_check
          %p820 = pneg %p440
        $region114: #{tpu_custom_call.1} parent=99 // pred_check_branch
          %822 = sbr.rel (%p820) target = $region116
        $region115: #{tpu_custom_call.1} parent=99 // pred_region
          %823 = dma.done %s816, 256
        $region116: #{tpu_custom_call.1} parent=99 // pred_fallthru
          _
        %s824 = sand.u32 %s63, 1
        %s825 = scalar_lea.sflag [#allocation6], %s824
        %s826 = sand.u32 %s63, 1
        %s827 = smul.addr %s826, 8
        %s828 = scalar_lea.vmem [#allocation5], %s827
        %p829 = pneg %p76
        %p830 = pneg %p73
        %s831 = sand.u32 %s43, 1
        %s832 = scalar_lea.sflag [#allocation9], %s831
        %s833 = sand.u32 %s89, 1
        %s834 = smul.addr %s833, 8
        %s835 = scalar_lea.vmem [#allocation8], %s834
        %p836 = pneg %p102
        %p837 = pneg %p99
        %p838 = scmp.lt.s32.totalorder %s48, 1
        %s839 = scalar_select %p838, %s48, 1
        %s840 = smul.addr %s839, 4
        %s841 = smul.addr %s840, 4
        %s842 = scalar_lea.vmem %s2, %s841
        %p843 = pneg %p128
        %p844 = pneg %p125
        %p845 = scmp.lt.s32.totalorder %s48, 1
        %s846 = scalar_select %p845, %s48, 1
        %s847 = smul.addr %s846, 4
        %s848 = smul.addr %s847, 4
        %s849 = scalar_lea.vmem %s3, %s848
        %p850 = pneg %p154
        %p851 = pneg %p151
        %p852 = scmp.lt.s32.totalorder %s48, 1
        %s853 = scalar_select %p852, %s48, 1
        %s854 = smul.addr %s853, 4
        %s855 = smul.addr %s854, 4
        %s856 = scalar_lea.vmem %s4, %s855
        %p857 = pneg %p180
        %p858 = pneg %p177
        %s859 = sand.u32 %s43, 1
        %s860 = scalar_lea.sflag [#allocation9], %s859
        %s861 = sand.u32 %s193, 1
        %s862 = smul.addr %s861, 16
        %s863 = scalar_lea.vmem [#allocation10], %s862
        %p864 = pneg %p206
        %p865 = pneg %p203
        %p866 = scmp.lt.s32.totalorder %s48, 1
        %s867 = scalar_select %p866, %s48, 1
        %s868 = scalar_lea.vmem %s6, %s867
        %p869 = pneg %p232
        %p870 = pneg %p229
        %p871 = scmp.lt.s32.totalorder %s48, 1
        %s872 = scalar_select %p871, %s48, 1
        %s873 = scalar_lea.vmem %s7, %s872
        %p874 = pneg %p258
        %p875 = pneg %p255
        %p876 = scmp.lt.s32.totalorder %s48, 1
        %s877 = scalar_select %p876, %s48, 1
        %s878 = scalar_lea.vmem %s8, %s877
        %p879 = pneg %p284
        %p880 = pneg %p281
        %p881 = scmp.lt.s32.totalorder %s48, 1
        %s882 = scalar_select %p881, %s48, 1
        %s883 = scalar_lea.vmem %s9, %s882
        %p884 = pneg %p310
        %p885 = pneg %p307
        %p886 = scmp.lt.s32.totalorder %s48, 1
        %s887 = scalar_select %p886, %s48, 1
        %s888 = scalar_lea.vmem %s10, %s887
        %p889 = pneg %p336
        %p890 = pneg %p333
        %p891 = scmp.lt.s32.totalorder %s48, 1
        %s892 = scalar_select %p891, %s48, 1
        %s893 = scalar_lea.vmem %s11, %s892
        %p894 = pneg %p362
        %p895 = pneg %p359
        %p896 = scmp.lt.s32.totalorder %s48, 1
        %s897 = scalar_select %p896, %s48, 1
        %s898 = scalar_lea.vmem %s12, %s897
        %p899 = pneg %p388
        %p900 = pneg %p385
        %p901 = scmp.lt.s32.totalorder %s48, 1
        %s902 = scalar_select %p901, %s48, 1
        %s903 = scalar_lea.vmem %s13, %s902
        %p904 = pneg %p414
        %p905 = pneg %p411
        %s906 = sand.u32 %s427, 1
        %s907 = scalar_lea.sflag [#allocation12], %s906
        %s908 = sand.u32 %s427, 1
        %s909 = smul.addr %s908, 16
        %s910 = scalar_lea.vmem [#allocation11], %s909
        %p911 = pneg %p440
        %p912 = pneg %p437
        %p913 = scmp.lt.s32.totalorder %s48, 1
        %s914 = scalar_select %p913, %s48, 1
        %s915 = scalar_lea.vmem %s15, %s914
        %p916 = pneg %p466
        %p917 = pneg %p463
        %p918 = scmp.lt.s32.totalorder %s48, 1
        %s919 = scalar_select %p918, %s48, 1
        %s920 = smul.addr %s919, 8
        %s921 = smul.addr %s920, 4
        %s922 = scalar_lea.vmem %s16, %s921
        %p923 = pneg %p492
        %p924 = pneg %p489
        %p925 = scmp.lt.s32.totalorder %s48, 1
        %s926 = scalar_select %p925, %s48, 1
        %s927 = scalar_lea.vmem %s17, %s926
        %p928 = pneg %p518
        %p929 = pneg %p515
        %p930 = pneg %p539
        %p931 = pneg %p536
        %p932 = pneg %p560
        %p933 = pneg %p557
        %p934 = pneg %p586
        %p935 = pneg %p583
        %s936 = sand.u32 %s573, 1
        %s937 = scalar_lea.sflag [#allocation7], %s936
        %s938 = sand.u32 %s573, 1
        %s939 = smul.addr %s938, 8
        %s940 = scalar_lea.vmem [#allocation13], %s939
        %p941 = scmp.lt.s32.totalorder %s48, 1
        %s942 = scalar_select %p941, %s48, 1
        %s943 = smul.addr %s942, 4
        %s944 = smul.addr %s943, 4
        %s945 = scalar_lea.vmem %s2, %s944
        %p946 = scmp.lt.s32.totalorder %s48, 1
        %s947 = scalar_select %p946, %s48, 1
        %s948 = smul.addr %s947, 4
        %s949 = smul.addr %s948, 4
        %s950 = scalar_lea.vmem %s3, %s949
        %p951 = scmp.lt.s32.totalorder %s48, 1
        %s952 = scalar_select %p951, %s48, 1
        %s953 = smul.addr %s952, 4
        %s954 = smul.addr %s953, 4
        %s955 = scalar_lea.vmem %s4, %s954
        %p956 = scmp.lt.s32.totalorder %s48, 1
        %s957 = scalar_select %p956, %s48, 1
        %s958 = scalar_lea.vmem %s6, %s957
        %p959 = scmp.lt.s32.totalorder %s48, 1
        %s960 = scalar_select %p959, %s48, 1
        %s961 = scalar_lea.vmem %s7, %s960
        %p962 = scmp.lt.s32.totalorder %s48, 1
        %s963 = scalar_select %p962, %s48, 1
        %s964 = scalar_lea.vmem %s8, %s963
        %p965 = scmp.lt.s32.totalorder %s48, 1
        %s966 = scalar_select %p965, %s48, 1
        %s967 = scalar_lea.vmem %s9, %s966
        %p968 = scmp.lt.s32.totalorder %s48, 1
        %s969 = scalar_select %p968, %s48, 1
        %s970 = scalar_lea.vmem %s10, %s969
        %p971 = scmp.lt.s32.totalorder %s48, 1
        %s972 = scalar_select %p971, %s48, 1
        %s973 = scalar_lea.vmem %s11, %s972
        %p974 = scmp.lt.s32.totalorder %s48, 1
        %s975 = scalar_select %p974, %s48, 1
        %s976 = scalar_lea.vmem %s12, %s975
        %p977 = scmp.lt.s32.totalorder %s48, 1
        %s978 = scalar_select %p977, %s48, 1
        %s979 = scalar_lea.vmem %s13, %s978
        %p980 = scmp.lt.s32.totalorder %s48, 1
        %s981 = scalar_select %p980, %s48, 1
        %s982 = scalar_lea.vmem %s15, %s981
        %p983 = scmp.lt.s32.totalorder %s48, 1
        %s984 = scalar_select %p983, %s48, 1
        %s985 = smul.addr %s984, 8
        %s986 = smul.addr %s985, 4
        %s987 = scalar_lea.vmem %s16, %s986
        %p988 = scmp.lt.s32.totalorder %s48, 1
        %s989 = scalar_select %p988, %s48, 1
        %s990 = scalar_lea.vmem %s17, %s989
        %p992 = scmp.eq.s32.totalorder %s48, 0
        // Predicated region
        $region117: #{tpu_custom_call.1} parent=99 // pred_check
          %p993 = pneg %p992
        $region118: #{tpu_custom_call.1} parent=99 // pred_check_branch
          %995 = sbr.rel (%p993) target = $region120
        $region119: #{tpu_custom_call.1} parent=99 // pred_region
          %v996 = vld [vmem:[%s792] sm:$0xff]
          %vm997 = vcmask 261120
          %998 = vst.msk [vmem:[#allocation2] sm:$0xff] %vm997, %v996
        $region120: #{tpu_custom_call.1} parent=99 // pred_fallthru
          _
        %v999 = vld [vmem:[#allocation2] sm:$0xff]
        %v1000 = vld [vmem:[%s801] sm:$0xff]
        %v1001 = vadd.f32 %v999, %v1000
        %v1002 = vpack.c.bf16 %v1001, %v1001
        %v1003 = vpack.c.bf16 %v999, %v999
        %v1004 = vld [vmem:[%s945] sm:$0xf]
        %v1005 = vld [vmem:[%s945 + $0x4] sm:$0xf]
        %v1006 = vld [vmem:[%s945 + $0x8] sm:$0xf]
        %v1007 = vld [vmem:[%s945 + $0xc] sm:$0xf]
        %v1008 = vld [vmem:[%s958] sm:$0x1]
        %v1010 = vlaneseq
        %v1011 = vshrl.u32 %v1010, 7
        %v1012 = vsub.s32 0, %v1011
        %v1013 = vrot.slane %v1008, %v1012
        %v1019 = vunpack.c.l.b16 %v1004
        %v1020 = vunpack.c.l.b16 %v1005
        %v1021 = vunpack.c.l.b16 %v1006
        %v1022 = vunpack.c.l.b16 %v1007
        %v1023 = vpack.c.b16 %v1020, %v1019
        %v1024 = vpack.c.b16 %v1022, %v1021
        %vm1027 = vcmask 261120
        %v1029 = vsel %vm1027, %v1002, 0
        %1031 = vmatprep.subr.bf16.mxu0 0
        %1032 = vmatpush1.bf16.msra.mxu0 %v1023
        %1033 = vmatprep.subr.bf16.mxu0 0
        %1034 = vmatpush1.bf16.msra.mxu0 %v1024
        %1035 = vmatprep.subr.bf16.mxu0 0
        %1036 = vmatpush1.bf16.msra.mxu0 0
        %1037 = vmatprep.subr.bf16.mxu0 0
        %1038 = vmatpush1.bf16.msra.mxu0 0
        %1039 = vmatprep.subr.bf16.mxu0 0
        %1040 = vmatpush1.bf16.msra.mxu0 0
        %1041 = vmatprep.subr.bf16.mxu0 0
        %1042 = vmatpush1.bf16.msra.mxu0 0
        %1043 = vmatprep.subr.bf16.mxu0 0
        %1044 = vmatpush1.bf16.msra.mxu0 0
        %1045 = vmatprep.subr.bf16.mxu0 0
        %1046 = vmatpush1.bf16.msra.mxu0 0
        %1047 = vmatprep.subr.bf16.mxu0 0
        %1048 = vmatpush1.bf16.msra.mxu0 0
        %1049 = vmatprep.subr.bf16.mxu0 0
        %1050 = vmatpush1.bf16.msra.mxu0 0
        %1051 = vmatprep.subr.bf16.mxu0 0
        %1052 = vmatpush1.bf16.msra.mxu0 0
        %1053 = vmatprep.subr.bf16.mxu0 0
        %1054 = vmatpush1.bf16.msra.mxu0 0
        %1055 = vmatprep.subr.bf16.mxu0 0
        %1056 = vmatpush1.bf16.msra.mxu0 0
        %1057 = vmatprep.subr.bf16.mxu0 0
        %1058 = vmatpush1.bf16.msra.mxu0 0
        %1059 = vmatprep.subr.bf16.mxu0 0
        %1060 = vmatpush1.bf16.msra.mxu0 0
        %1061 = vmatprep.subr.bf16.mxu0 0
        %1062 = vmatpush1.bf16.msra.mxu0 0
        %1063 = vmatprep.mubr.bf16.mxu0 0
        %1064 = vmatmul.mubr.bf16.gmra.mrb[0].mxu0 %v1029
        %v1065 = vpop.f32.mrb[0].mxu0
        %v1066 = vadd.f32 %v1013, %v1065
        %v1067 = vpop.f32.mrb[0].mxu0
        %v1068 = vpop.f32.mrb[0].mxu0
        %v1069 = vpop.f32.mrb[0].mxu0
        %1070 = vdwg.mxu0
        %v1071 = vld [vmem:[%s950] sm:$0xf]
        %v1072 = vld [vmem:[%s950 + $0x4] sm:$0xf]
        %v1073 = vld [vmem:[%s950 + $0x8] sm:$0xf]
        %v1074 = vld [vmem:[%s950 + $0xc] sm:$0xf]
        %v1075 = vld [vmem:[%s961] sm:$0x1]
        %v1077 = vlaneseq
        %v1078 = vshrl.u32 %v1077, 7
        %v1079 = vsub.s32 0, %v1078
        %v1080 = vrot.slane %v1075, %v1079
        %v1086 = vunpack.c.l.b16 %v1071
        %v1087 = vunpack.c.l.b16 %v1072
        %v1088 = vunpack.c.l.b16 %v1073
        %v1089 = vunpack.c.l.b16 %v1074
        %v1090 = vpack.c.b16 %v1087, %v1086
        %v1091 = vpack.c.b16 %v1089, %v1088
        %1094 = vmatprep.subr.bf16.mxu0 0
        %1095 = vmatpush1.bf16.msra.mxu0 %v1090
        %1096 = vmatprep.subr.bf16.mxu0 0
        %1097 = vmatpush1.bf16.msra.mxu0 %v1091
        %1098 = vmatprep.subr.bf16.mxu0 0
        %1099 = vmatpush1.bf16.msra.mxu0 0
        %1100 = vmatprep.subr.bf16.mxu0 0
        %1101 = vmatpush1.bf16.msra.mxu0 0
        %1102 = vmatprep.subr.bf16.mxu0 0
        %1103 = vmatpush1.bf16.msra.mxu0 0
        %1104 = vmatprep.subr.bf16.mxu0 0
        %1105 = vmatpush1.bf16.msra.mxu0 0
        %1106 = vmatprep.subr.bf16.mxu0 0
        %1107 = vmatpush1.bf16.msra.mxu0 0
        %1108 = vmatprep.subr.bf16.mxu0 0
        %1109 = vmatpush1.bf16.msra.mxu0 0
        %1110 = vmatprep.subr.bf16.mxu0 0
        %1111 = vmatpush1.bf16.msra.mxu0 0
        %1112 = vmatprep.subr.bf16.mxu0 0
        %1113 = vmatpush1.bf16.msra.mxu0 0
        %1114 = vmatprep.subr.bf16.mxu0 0
        %1115 = vmatpush1.bf16.msra.mxu0 0
        %1116 = vmatprep.subr.bf16.mxu0 0
        %1117 = vmatpush1.bf16.msra.mxu0 0
        %1118 = vmatprep.subr.bf16.mxu0 0
        %1119 = vmatpush1.bf16.msra.mxu0 0
        %1120 = vmatprep.subr.bf16.mxu0 0
        %1121 = vmatpush1.bf16.msra.mxu0 0
        %1122 = vmatprep.subr.bf16.mxu0 0
        %1123 = vmatpush1.bf16.msra.mxu0 0
        %1124 = vmatprep.subr.bf16.mxu0 0
        %1125 = vmatpush1.bf16.msra.mxu0 0
        %1126 = vmatprep.mubr.bf16.mxu0 0
        %1127 = vmatmul.mubr.bf16.gmra.mrb[0].mxu0 %v1029
        %v1128 = vpop.f32.mrb[0].mxu0
        %v1129 = vadd.f32 %v1080, %v1128
        %v1130 = vpop.f32.mrb[0].mxu0
        %v1131 = vpop.f32.mrb[0].mxu0
        %v1132 = vpop.f32.mrb[0].mxu0
        %1133 = vdwg.mxu0
        %v1134 = vld [vmem:[%s955] sm:$0xf]
        %v1135 = vld [vmem:[%s955 + $0x4] sm:$0xf]
        %v1136 = vld [vmem:[%s955 + $0x8] sm:$0xf]
        %v1137 = vld [vmem:[%s955 + $0xc] sm:$0xf]
        %v1138 = vld [vmem:[%s964] sm:$0x1]
        %v1140 = vlaneseq
        %v1141 = vshrl.u32 %v1140, 7
        %v1142 = vsub.s32 0, %v1141
        %v1143 = vrot.slane %v1138, %v1142
        %v1149 = vunpack.c.l.b16 %v1134
        %v1150 = vunpack.c.l.b16 %v1135
        %v1151 = vunpack.c.l.b16 %v1136
        %v1152 = vunpack.c.l.b16 %v1137
        %v1153 = vpack.c.b16 %v1150, %v1149
        %v1154 = vpack.c.b16 %v1152, %v1151
        %v1158 = vsel %vm1027, %v1003, 0
        %1160 = vmatprep.subr.bf16.mxu0 0
        %1161 = vmatpush1.bf16.msra.mxu0 %v1153
        %1162 = vmatprep.subr.bf16.mxu0 0
        %1163 = vmatpush1.bf16.msra.mxu0 %v1154
        %1164 = vmatprep.subr.bf16.mxu0 0
        %1165 = vmatpush1.bf16.msra.mxu0 0
        %1166 = vmatprep.subr.bf16.mxu0 0
        %1167 = vmatpush1.bf16.msra.mxu0 0
        %1168 = vmatprep.subr.bf16.mxu0 0
        %1169 = vmatpush1.bf16.msra.mxu0 0
        %1170 = vmatprep.subr.bf16.mxu0 0
        %1171 = vmatpush1.bf16.msra.mxu0 0
        %1172 = vmatprep.subr.bf16.mxu0 0
        %1173 = vmatpush1.bf16.msra.mxu0 0
        %1174 = vmatprep.subr.bf16.mxu0 0
        %1175 = vmatpush1.bf16.msra.mxu0 0
        %1176 = vmatprep.subr.bf16.mxu0 0
        %1177 = vmatpush1.bf16.msra.mxu0 0
        %1178 = vmatprep.subr.bf16.mxu0 0
        %1179 = vmatpush1.bf16.msra.mxu0 0
        %1180 = vmatprep.subr.bf16.mxu0 0
        %1181 = vmatpush1.bf16.msra.mxu0 0
        %1182 = vmatprep.subr.bf16.mxu0 0
        %1183 = vmatpush1.bf16.msra.mxu0 0
        %1184 = vmatprep.subr.bf16.mxu0 0
        %1185 = vmatpush1.bf16.msra.mxu0 0
        %1186 = vmatprep.subr.bf16.mxu0 0
        %1187 = vmatpush1.bf16.msra.mxu0 0
        %1188 = vmatprep.subr.bf16.mxu0 0
        %1189 = vmatpush1.bf16.msra.mxu0 0
        %1190 = vmatprep.subr.bf16.mxu0 0
        %1191 = vmatpush1.bf16.msra.mxu0 0
        %1192 = vmatprep.mubr.bf16.mxu0 0
        %1193 = vmatmul.mubr.bf16.gmra.mrb[0].mxu0 %v1158
        %v1194 = vpop.f32.mrb[0].mxu0
        %v1195 = vadd.f32 %v1143, %v1194
        %v1196 = vpop.f32.mrb[0].mxu0
        %v1197 = vpop.f32.mrb[0].mxu0
        %v1198 = vpop.f32.mrb[0].mxu0
        %1199 = vdwg.mxu0
        %v1200 = vpack.c.bf16 %v1066, %v1066
        %vm1201 = vcmask 257024
        %1202 = vst.msk [vmem:[#allocation3] sm:$0xf] %vm1201, %v1200
        %v1203 = vpack.c.bf16 %v1129, %v1129
        %s1204 = scalar_lea.vmem [#allocation3], 4
        %1205 = vst.msk [vmem:[%s1204] sm:$0xf] %vm1201, %v1203
        %v1206 = vpack.c.bf16 %v1195, %v1195
        %s1207 = scalar_lea.vmem [#allocation3], 8
        %1208 = vst.msk [vmem:[%s1207] sm:$0xf] %vm1201, %v1206
        %v1209 = vld [vmem:[#allocation3] sm:$0xf]
        %v1210 = vld [vmem:[%s1204] sm:$0xf]
        %v1211 = vld [vmem:[%s1207] sm:$0xf]
        %vm1212 = vcmask 64512
        %v1214 = vsel %vm1212, %v1209, 0
        %v1217 = vsel %vm1212, %v1210, 0
        %1219 = vmatprep.subr.bf16.mxu0 0
        %1220 = vmatpush1.bf16.xpose.msra.mxu0 %v1217
        %1221 = vmatprep.subr.bf16.mxu0 0
        %1222 = vmatpush1.bf16.xpose.msra.mxu0 0
        %1223 = vmatprep.subr.bf16.mxu0 0
        %1224 = vmatpush1.bf16.xpose.msra.mxu0 0
        %1225 = vmatprep.subr.bf16.mxu0 0
        %1226 = vmatpush1.bf16.xpose.msra.mxu0 0
        %1227 = vmatprep.subr.bf16.mxu0 0
        %1228 = vmatpush1.bf16.xpose.msra.mxu0 0
        %1229 = vmatprep.subr.bf16.mxu0 0
        %1230 = vmatpush1.bf16.xpose.msra.mxu0 0
        %1231 = vmatprep.subr.bf16.mxu0 0
        %1232 = vmatpush1.bf16.xpose.msra.mxu0 0
        %1233 = vmatprep.subr.bf16.mxu0 0
        %1234 = vmatpush1.bf16.xpose.msra.mxu0 0
        %1235 = vmatprep.subr.bf16.mxu0 0
        %1236 = vmatpush1.bf16.xpose.msra.mxu0 0
        %1237 = vmatprep.subr.bf16.mxu0 0
        %1238 = vmatpush1.bf16.xpose.msra.mxu0 0
        %1239 = vmatprep.subr.bf16.mxu0 0
        %1240 = vmatpush1.bf16.xpose.msra.mxu0 0
        %1241 = vmatprep.subr.bf16.mxu0 0
        %1242 = vmatpush1.bf16.xpose.msra.mxu0 0
        %1243 = vmatprep.subr.bf16.mxu0 0
        %1244 = vmatpush1.bf16.xpose.msra.mxu0 0
        %1245 = vmatprep.subr.bf16.mxu0 0
        %1246 = vmatpush1.bf16.xpose.msra.mxu0 0
        %1247 = vmatprep.subr.bf16.mxu0 0
        %1248 = vmatpush1.bf16.xpose.msra.mxu0 0
        %1249 = vmatprep.subr.bf16.mxu0 0
        %1250 = vmatpush1.bf16.xpose.msra.mxu0 0
        %1251 = vmatprep.mubr.bf16.mxu0 0
        %1252 = vmatmul.mubr.bf16.gmra.mrb[0].mxu0 %v1214
        %v1253 = vpop.f32.mrb[0].mxu0
        %v1254 = vadd.f32 0.0, %v1253
        %v1255 = vpop.f32.mrb[0].mxu0
        %v1256 = vpop.f32.mrb[0].mxu0
        %v1257 = vpop.f32.mrb[0].mxu0
        %1258 = vdwg.mxu0
        %v1259 = vmul.f32 %v1254, 0.35355338
        %v1260 = vsel %vm1212, %v1259, -inf
        %1261 = vmax.xlane.f32.xlu0 %v1260
        %v1262 = vpop.xlane.xlu0 %1261
        %v1263 = vsub.f32 %v1259, %v1262
        %v1264 = vmul.f32 %v1263, 1.442695
        %v1265 = vpow.pop %v1264
        %v1266 = vsel %vm1212, %v1265, 0.0
        %1267 = vadd.xlane.f32.xlu0 %v1266
        %v1268 = vpop.xlane.xlu0 %1267
        %v1269 = vrcp.pop %v1268
        %v1270 = vmul.f32 %v1265, %v1269
        %v1271 = vpack.c.bf16 %v1270, %v1270
        %v1273 = vsel %vm1212, %v1271, 0
        %vm1275 = vcmask 1043456
        %v1277 = vsel %vm1275, %v1211, 0
        %1279 = vmatprep.subr.bf16.mxu0 0
        %1280 = vmatpush1.bf16.msra.mxu0 %v1277
        %1281 = vmatprep.subr.bf16.mxu0 0
        %1282 = vmatpush1.bf16.msra.mxu0 0
        %1283 = vmatprep.subr.bf16.mxu0 0
        %1284 = vmatpush1.bf16.msra.mxu0 0
        %1285 = vmatprep.subr.bf16.mxu0 0
        %1286 = vmatpush1.bf16.msra.mxu0 0
        %1287 = vmatprep.subr.bf16.mxu0 0
        %1288 = vmatpush1.bf16.msra.mxu0 0
        %1289 = vmatprep.subr.bf16.mxu0 0
        %1290 = vmatpush1.bf16.msra.mxu0 0
        %1291 = vmatprep.subr.bf16.mxu0 0
        %1292 = vmatpush1.bf16.msra.mxu0 0
        %1293 = vmatprep.subr.bf16.mxu0 0
        %1294 = vmatpush1.bf16.msra.mxu0 0
        %1295 = vmatprep.subr.bf16.mxu0 0
        %1296 = vmatpush1.bf16.msra.mxu0 0
        %1297 = vmatprep.subr.bf16.mxu0 0
        %1298 = vmatpush1.bf16.msra.mxu0 0
        %1299 = vmatprep.subr.bf16.mxu0 0
        %1300 = vmatpush1.bf16.msra.mxu0 0
        %1301 = vmatprep.subr.bf16.mxu0 0
        %1302 = vmatpush1.bf16.msra.mxu0 0
        %1303 = vmatprep.subr.bf16.mxu0 0
        %1304 = vmatpush1.bf16.msra.mxu0 0
        %1305 = vmatprep.subr.bf16.mxu0 0
        %1306 = vmatpush1.bf16.msra.mxu0 0
        %1307 = vmatprep.subr.bf16.mxu0 0
        %1308 = vmatpush1.bf16.msra.mxu0 0
        %1309 = vmatprep.subr.bf16.mxu0 0
        %1310 = vmatpush1.bf16.msra.mxu0 0
        %1311 = vmatprep.mubr.bf16.mxu0 0
        %1312 = vmatmul.mubr.bf16.gmra.mrb[0].mxu0 %v1273
        %v1313 = vpop.f32.mrb[0].mxu0
        %v1314 = vadd.f32 0.0, %v1313
        %v1315 = vpop.f32.mrb[0].mxu0
        %v1316 = vpop.f32.mrb[0].mxu0
        %v1317 = vpop.f32.mrb[0].mxu0
        %1318 = vdwg.mxu0
        %v1319 = vpack.c.bf16 %v1314, %v1314
        %vm1320 = vcmask 60416
        %1321 = vst.msk [vmem:[#allocation4] sm:$0xf] %vm1320, %v1319
        %v1322 = vld [vmem:[#allocation3] sm:$0xf]
        %v1323 = vld [vmem:[%s1204] sm:$0xf]
        %v1324 = vld [vmem:[%s1207] sm:$0xf]
        %v1326 = vunpack.c.l.b16 %v1322
        %v1327 = vpack.c.b16 %v1326, %v1326
        %1328 = vrot.lane.b32.xlu0 %v1327, 120
        %v1329 = vpop.permute.xlu0 %1328
        %v1331 = vunpack.c.l.b16 %v1323
        %v1332 = vpack.c.b16 %v1331, %v1331
        %1333 = vrot.lane.b32.xlu0 %v1332, 120
        %v1334 = vpop.permute.xlu0 %1333
        %v1336 = vsel %vm1212, %v1329, 0
        %v1339 = vsel %vm1212, %v1334, 0
        %1341 = vmatprep.subr.bf16.mxu0 0
        %1342 = vmatpush1.bf16.xpose.msra.mxu0 %v1339
        %1343 = vmatprep.subr.bf16.mxu0 0
        %1344 = vmatpush1.bf16.xpose.msra.mxu0 0
        %1345 = vmatprep.subr.bf16.mxu0 0
        %1346 = vmatpush1.bf16.xpose.msra.mxu0 0
        %1347 = vmatprep.subr.bf16.mxu0 0
        %1348 = vmatpush1.bf16.xpose.msra.mxu0 0
        %1349 = vmatprep.subr.bf16.mxu0 0
        %1350 = vmatpush1.bf16.xpose.msra.mxu0 0
        %1351 = vmatprep.subr.bf16.mxu0 0
        %1352 = vmatpush1.bf16.xpose.msra.mxu0 0
        %1353 = vmatprep.subr.bf16.mxu0 0
        %1354 = vmatpush1.bf16.xpose.msra.mxu0 0
        %1355 = vmatprep.subr.bf16.mxu0 0
        %1356 = vmatpush1.bf16.xpose.msra.mxu0 0
        %1357 = vmatprep.subr.bf16.mxu0 0
        %1358 = vmatpush1.bf16.xpose.msra.mxu0 0
        %1359 = vmatprep.subr.bf16.mxu0 0
        %1360 = vmatpush1.bf16.xpose.msra.mxu0 0
        %1361 = vmatprep.subr.bf16.mxu0 0
        %1362 = vmatpush1.bf16.xpose.msra.mxu0 0
        %1363 = vmatprep.subr.bf16.mxu0 0
        %1364 = vmatpush1.bf16.xpose.msra.mxu0 0
        %1365 = vmatprep.subr.bf16.mxu0 0
        %1366 = vmatpush1.bf16.xpose.msra.mxu0 0
        %1367 = vmatprep.subr.bf16.mxu0 0
        %1368 = vmatpush1.bf16.xpose.msra.mxu0 0
        %1369 = vmatprep.subr.bf16.mxu0 0
        %1370 = vmatpush1.bf16.xpose.msra.mxu0 0
        %1371 = vmatprep.subr.bf16.mxu0 0
        %1372 = vmatpush1.bf16.xpose.msra.mxu0 0
        %1373 = vmatprep.mubr.bf16.mxu0 0
        %1374 = vmatmul.mubr.bf16.gmra.mrb[0].mxu0 %v1336
        %v1375 = vpop.f32.mrb[0].mxu0
        %v1376 = vadd.f32 0.0, %v1375
        %v1377 = vpop.f32.mrb[0].mxu0
        %v1378 = vpop.f32.mrb[0].mxu0
        %v1379 = vpop.f32.mrb[0].mxu0
        %1380 = vdwg.mxu0
        %v1381 = vmul.f32 %v1376, 0.35355338
        %v1382 = vsel %vm1212, %v1381, -inf
        %1383 = vmax.xlane.f32.xlu0 %v1382
        %v1384 = vpop.xlane.xlu0 %1383
        %v1385 = vsub.f32 %v1381, %v1384
        %v1386 = vmul.f32 %v1385, 1.442695
        %v1387 = vpow.pop %v1386
        %v1388 = vsel %vm1212, %v1387, 0.0
        %1389 = vadd.xlane.f32.xlu0 %v1388
        %v1390 = vpop.xlane.xlu0 %1389
        %v1391 = vrcp.pop %v1390
        %v1392 = vmul.f32 %v1387, %v1391
        %v1393 = vpack.c.bf16 %v1392, %v1392
        %v1395 = vunpack.c.l.b16 %v1324
        %v1396 = vpack.c.b16 %v1395, %v1395
        %1397 = vrot.lane.b32.xlu0 %v1396, 120
        %v1398 = vpop.permute.xlu0 %1397
        %v1400 = vsel %vm1212, %v1393, 0
        %v1403 = vsel %vm1275, %v1398, 0
        %1405 = vmatprep.subr.bf16.mxu0 0
        %1406 = vmatpush1.bf16.msra.mxu0 %v1403
        %1407 = vmatprep.subr.bf16.mxu0 0
        %1408 = vmatpush1.bf16.msra.mxu0 0
        %1409 = vmatprep.subr.bf16.mxu0 0
        %1410 = vmatpush1.bf16.msra.mxu0 0
        %1411 = vmatprep.subr.bf16.mxu0 0
        %1412 = vmatpush1.bf16.msra.mxu0 0
        %1413 = vmatprep.subr.bf16.mxu0 0
        %1414 = vmatpush1.bf16.msra.mxu0 0
        %1415 = vmatprep.subr.bf16.mxu0 0
        %1416 = vmatpush1.bf16.msra.mxu0 0
        %1417 = vmatprep.subr.bf16.mxu0 0
        %1418 = vmatpush1.bf16.msra.mxu0 0
        %1419 = vmatprep.subr.bf16.mxu0 0
        %1420 = vmatpush1.bf16.msra.mxu0 0
        %1421 = vmatprep.subr.bf16.mxu0 0
        %1422 = vmatpush1.bf16.msra.mxu0 0
        %1423 = vmatprep.subr.bf16.mxu0 0
        %1424 = vmatpush1.bf16.msra.mxu0 0
        %1425 = vmatprep.subr.bf16.mxu0 0
        %1426 = vmatpush1.bf16.msra.mxu0 0
        %1427 = vmatprep.subr.bf16.mxu0 0
        %1428 = vmatpush1.bf16.msra.mxu0 0
        %1429 = vmatprep.subr.bf16.mxu0 0
        %1430 = vmatpush1.bf16.msra.mxu0 0
        %1431 = vmatprep.subr.bf16.mxu0 0
        %1432 = vmatpush1.bf16.msra.mxu0 0
        %1433 = vmatprep.subr.bf16.mxu0 0
        %1434 = vmatpush1.bf16.msra.mxu0 0
        %1435 = vmatprep.subr.bf16.mxu0 0
        %1436 = vmatpush1.bf16.msra.mxu0 0
        %1437 = vmatprep.mubr.bf16.mxu0 0
        %1438 = vmatmul.mubr.bf16.gmra.mrb[0].mxu0 %v1400
        %v1439 = vpop.f32.mrb[0].mxu0
        %v1440 = vadd.f32 0.0, %v1439
        %v1441 = vpop.f32.mrb[0].mxu0
        %v1442 = vpop.f32.mrb[0].mxu0
        %v1443 = vpop.f32.mrb[0].mxu0
        %1444 = vdwg.mxu0
        %v1445 = vpack.c.bf16 %v1440, %v1440
        %v1447 = vunpack.c.l.b16 %v1445
        %v1448 = vpack.c.b16 %v1447, %v1447
        %1449 = vrot.lane.b32.xlu0 %v1448, 8
        %v1450 = vpop.permute.xlu0 %1449
        %vm1452 = vcmask 126016
        %1453 = vst.msk [vmem:[#allocation4] sm:$0xf] %vm1452, %v1450
        %v1454 = vld [vmem:[#allocation3] sm:$0xf]
        %v1455 = vld [vmem:[%s1204] sm:$0xf]
        %v1456 = vld [vmem:[%s1207] sm:$0xf]
        %v1458 = vunpack.c.l.b16 %v1454
        %v1459 = vpack.c.b16 %v1458, %v1458
        %1460 = vrot.lane.b32.xlu0 %v1459, 112
        %v1461 = vpop.permute.xlu0 %1460
        %v1463 = vunpack.c.l.b16 %v1455
        %v1464 = vpack.c.b16 %v1463, %v1463
        %1465 = vrot.lane.b32.xlu0 %v1464, 112
        %v1466 = vpop.permute.xlu0 %1465
        %v1468 = vsel %vm1212, %v1461, 0
        %v1471 = vsel %vm1212, %v1466, 0
        %1473 = vmatprep.subr.bf16.mxu0 0
        %1474 = vmatpush1.bf16.xpose.msra.mxu0 %v1471
        %1475 = vmatprep.subr.bf16.mxu0 0
        %1476 = vmatpush1.bf16.xpose.msra.mxu0 0
        %1477 = vmatprep.subr.bf16.mxu0 0
        %1478 = vmatpush1.bf16.xpose.msra.mxu0 0
        %1479 = vmatprep.subr.bf16.mxu0 0
        %1480 = vmatpush1.bf16.xpose.msra.mxu0 0
        %1481 = vmatprep.subr.bf16.mxu0 0
        %1482 = vmatpush1.bf16.xpose.msra.mxu0 0
        %1483 = vmatprep.subr.bf16.mxu0 0
        %1484 = vmatpush1.bf16.xpose.msra.mxu0 0
        %1485 = vmatprep.subr.bf16.mxu0 0
        %1486 = vmatpush1.bf16.xpose.msra.mxu0 0
        %1487 = vmatprep.subr.bf16.mxu0 0
        %1488 = vmatpush1.bf16.xpose.msra.mxu0 0
        %1489 = vmatprep.subr.bf16.mxu0 0
        %1490 = vmatpush1.bf16.xpose.msra.mxu0 0
        %1491 = vmatprep.subr.bf16.mxu0 0
        %1492 = vmatpush1.bf16.xpose.msra.mxu0 0
        %1493 = vmatprep.subr.bf16.mxu0 0
        %1494 = vmatpush1.bf16.xpose.msra.mxu0 0
        %1495 = vmatprep.subr.bf16.mxu0 0
        %1496 = vmatpush1.bf16.xpose.msra.mxu0 0
        %1497 = vmatprep.subr.bf16.mxu0 0
        %1498 = vmatpush1.bf16.xpose.msra.mxu0 0
        %1499 = vmatprep.subr.bf16.mxu0 0
        %1500 = vmatpush1.bf16.xpose.msra.mxu0 0
        %1501 = vmatprep.subr.bf16.mxu0 0
        %1502 = vmatpush1.bf16.xpose.msra.mxu0 0
        %1503 = vmatprep.subr.bf16.mxu0 0
        %1504 = vmatpush1.bf16.xpose.msra.mxu0 0
        %1505 = vmatprep.mubr.bf16.mxu0 0
        %1506 = vmatmul.mubr.bf16.gmra.mrb[0].mxu0 %v1468
        %v1507 = vpop.f32.mrb[0].mxu0
        %v1508 = vadd.f32 0.0, %v1507
        %v1509 = vpop.f32.mrb[0].mxu0
        %v1510 = vpop.f32.mrb[0].mxu0
        %v1511 = vpop.f32.mrb[0].mxu0
        %1512 = vdwg.mxu0
        %v1513 = vmul.f32 %v1508, 0.35355338
        %v1514 = vsel %vm1212, %v1513, -inf
        %1515 = vmax.xlane.f32.xlu0 %v1514
        %v1516 = vpop.xlane.xlu0 %1515
        %v1517 = vsub.f32 %v1513, %v1516
        %v1518 = vmul.f32 %v1517, 1.442695
        %v1519 = vpow.pop %v1518
        %v1520 = vsel %vm1212, %v1519, 0.0
        %1521 = vadd.xlane.f32.xlu0 %v1520
        %v1522 = vpop.xlane.xlu0 %1521
        %v1523 = vrcp.pop %v1522
        %v1524 = vmul.f32 %v1519, %v1523
        %v1525 = vpack.c.bf16 %v1524, %v1524
        %v1527 = vunpack.c.l.b16 %v1456
        %v1528 = vpack.c.b16 %v1527, %v1527
        %1529 = vrot.lane.b32.xlu0 %v1528, 112
        %v1530 = vpop.permute.xlu0 %1529
        %v1532 = vsel %vm1212, %v1525, 0
        %v1535 = vsel %vm1275, %v1530, 0
        %1537 = vmatprep.subr.bf16.mxu0 0
        %1538 = vmatpush1.bf16.msra.mxu0 %v1535
        %1539 = vmatprep.subr.bf16.mxu0 0
        %1540 = vmatpush1.bf16.msra.mxu0 0
        %1541 = vmatprep.subr.bf16.mxu0 0
        %1542 = vmatpush1.bf16.msra.mxu0 0
        %1543 = vmatprep.subr.bf16.mxu0 0
        %1544 = vmatpush1.bf16.msra.mxu0 0
        %1545 = vmatprep.subr.bf16.mxu0 0
        %1546 = vmatpush1.bf16.msra.mxu0 0
        %1547 = vmatprep.subr.bf16.mxu0 0
        %1548 = vmatpush1.bf16.msra.mxu0 0
        %1549 = vmatprep.subr.bf16.mxu0 0
        %1550 = vmatpush1.bf16.msra.mxu0 0
        %1551 = vmatprep.subr.bf16.mxu0 0
        %1552 = vmatpush1.bf16.msra.mxu0 0
        %1553 = vmatprep.subr.bf16.mxu0 0
        %1554 = vmatpush1.bf16.msra.mxu0 0
        %1555 = vmatprep.subr.bf16.mxu0 0
        %1556 = vmatpush1.bf16.msra.mxu0 0
        %1557 = vmatprep.subr.bf16.mxu0 0
        %1558 = vmatpush1.bf16.msra.mxu0 0
        %1559 = vmatprep.subr.bf16.mxu0 0
        %1560 = vmatpush1.bf16.msra.mxu0 0
        %1561 = vmatprep.subr.bf16.mxu0 0
        %1562 = vmatpush1.bf16.msra.mxu0 0
        %1563 = vmatprep.subr.bf16.mxu0 0
        %1564 = vmatpush1.bf16.msra.mxu0 0
        %1565 = vmatprep.subr.bf16.mxu0 0
        %1566 = vmatpush1.bf16.msra.mxu0 0
        %1567 = vmatprep.subr.bf16.mxu0 0
        %1568 = vmatpush1.bf16.msra.mxu0 0
        %1569 = vmatprep.mubr.bf16.mxu0 0
        %1570 = vmatmul.mubr.bf16.gmra.mrb[0].mxu0 %v1532
        %v1571 = vpop.f32.mrb[0].mxu0
        %v1572 = vadd.f32 0.0, %v1571
        %v1573 = vpop.f32.mrb[0].mxu0
        %v1574 = vpop.f32.mrb[0].mxu0
        %v1575 = vpop.f32.mrb[0].mxu0
        %1576 = vdwg.mxu0
        %v1577 = vpack.c.bf16 %v1572, %v1572
        %v1579 = vunpack.c.l.b16 %v1577
        %v1580 = vpack.c.b16 %v1579, %v1579
        %1581 = vrot.lane.b32.xlu0 %v1580, 16
        %v1582 = vpop.permute.xlu0 %1581
        %vm1584 = vcmask 191616
        %1585 = vst.msk [vmem:[#allocation4] sm:$0xf] %vm1584, %v1582
        %v1586 = vld [vmem:[#allocation3] sm:$0xf]
        %v1587 = vld [vmem:[%s1204] sm:$0xf]
        %v1588 = vld [vmem:[%s1207] sm:$0xf]
        %v1590 = vunpack.c.l.b16 %v1586
        %v1591 = vpack.c.b16 %v1590, %v1590
        %1592 = vrot.lane.b32.xlu0 %v1591, 104
        %v1593 = vpop.permute.xlu0 %1592
        %v1595 = vunpack.c.l.b16 %v1587
        %v1596 = vpack.c.b16 %v1595, %v1595
        %1597 = vrot.lane.b32.xlu0 %v1596, 104
        %v1598 = vpop.permute.xlu0 %1597
        %v1600 = vsel %vm1212, %v1593, 0
        %v1603 = vsel %vm1212, %v1598, 0
        %1605 = vmatprep.subr.bf16.mxu0 0
        %1606 = vmatpush1.bf16.xpose.msra.mxu0 %v1603
        %1607 = vmatprep.subr.bf16.mxu0 0
        %1608 = vmatpush1.bf16.xpose.msra.mxu0 0
        %1609 = vmatprep.subr.bf16.mxu0 0
        %1610 = vmatpush1.bf16.xpose.msra.mxu0 0
        %1611 = vmatprep.subr.bf16.mxu0 0
        %1612 = vmatpush1.bf16.xpose.msra.mxu0 0
        %1613 = vmatprep.subr.bf16.mxu0 0
        %1614 = vmatpush1.bf16.xpose.msra.mxu0 0
        %1615 = vmatprep.subr.bf16.mxu0 0
        %1616 = vmatpush1.bf16.xpose.msra.mxu0 0
        %1617 = vmatprep.subr.bf16.mxu0 0
        %1618 = vmatpush1.bf16.xpose.msra.mxu0 0
        %1619 = vmatprep.subr.bf16.mxu0 0
        %1620 = vmatpush1.bf16.xpose.msra.mxu0 0
        %1621 = vmatprep.subr.bf16.mxu0 0
        %1622 = vmatpush1.bf16.xpose.msra.mxu0 0
        %1623 = vmatprep.subr.bf16.mxu0 0
        %1624 = vmatpush1.bf16.xpose.msra.mxu0 0
        %1625 = vmatprep.subr.bf16.mxu0 0
        %1626 = vmatpush1.bf16.xpose.msra.mxu0 0
        %1627 = vmatprep.subr.bf16.mxu0 0
        %1628 = vmatpush1.bf16.xpose.msra.mxu0 0
        %1629 = vmatprep.subr.bf16.mxu0 0
        %1630 = vmatpush1.bf16.xpose.msra.mxu0 0
        %1631 = vmatprep.subr.bf16.mxu0 0
        %1632 = vmatpush1.bf16.xpose.msra.mxu0 0
        %1633 = vmatprep.subr.bf16.mxu0 0
        %1634 = vmatpush1.bf16.xpose.msra.mxu0 0
        %1635 = vmatprep.subr.bf16.mxu0 0
        %1636 = vmatpush1.bf16.xpose.msra.mxu0 0
        %1637 = vmatprep.mubr.bf16.mxu0 0
        %1638 = vmatmul.mubr.bf16.gmra.mrb[0].mxu0 %v1600
        %v1639 = vpop.f32.mrb[0].mxu0
        %v1640 = vadd.f32 0.0, %v1639
        %v1641 = vpop.f32.mrb[0].mxu0
        %v1642 = vpop.f32.mrb[0].mxu0
        %v1643 = vpop.f32.mrb[0].mxu0
        %1644 = vdwg.mxu0
        %v1645 = vmul.f32 %v1640, 0.35355338
        %v1646 = vsel %vm1212, %v1645, -inf
        %1647 = vmax.xlane.f32.xlu0 %v1646
        %v1648 = vpop.xlane.xlu0 %1647
        %v1649 = vsub.f32 %v1645, %v1648
        %v1650 = vmul.f32 %v1649, 1.442695
        %v1651 = vpow.pop %v1650
        %v1652 = vsel %vm1212, %v1651, 0.0
        %1653 = vadd.xlane.f32.xlu0 %v1652
        %v1654 = vpop.xlane.xlu0 %1653
        %v1655 = vrcp.pop %v1654
        %v1656 = vmul.f32 %v1651, %v1655
        %v1657 = vpack.c.bf16 %v1656, %v1656
        %v1659 = vunpack.c.l.b16 %v1588
        %v1660 = vpack.c.b16 %v1659, %v1659
        %1661 = vrot.lane.b32.xlu0 %v1660, 104
        %v1662 = vpop.permute.xlu0 %1661
        %v1664 = vsel %vm1212, %v1657, 0
        %v1667 = vsel %vm1275, %v1662, 0
        %1669 = vmatprep.subr.bf16.mxu0 0
        %1670 = vmatpush1.bf16.msra.mxu0 %v1667
        %1671 = vmatprep.subr.bf16.mxu0 0
        %1672 = vmatpush1.bf16.msra.mxu0 0
        %1673 = vmatprep.subr.bf16.mxu0 0
        %1674 = vmatpush1.bf16.msra.mxu0 0
        %1675 = vmatprep.subr.bf16.mxu0 0
        %1676 = vmatpush1.bf16.msra.mxu0 0
        %1677 = vmatprep.subr.bf16.mxu0 0
        %1678 = vmatpush1.bf16.msra.mxu0 0
        %1679 = vmatprep.subr.bf16.mxu0 0
        %1680 = vmatpush1.bf16.msra.mxu0 0
        %1681 = vmatprep.subr.bf16.mxu0 0
        %1682 = vmatpush1.bf16.msra.mxu0 0
        %1683 = vmatprep.subr.bf16.mxu0 0
        %1684 = vmatpush1.bf16.msra.mxu0 0
        %1685 = vmatprep.subr.bf16.mxu0 0
        %1686 = vmatpush1.bf16.msra.mxu0 0
        %1687 = vmatprep.subr.bf16.mxu0 0
        %1688 = vmatpush1.bf16.msra.mxu0 0
        %1689 = vmatprep.subr.bf16.mxu0 0
        %1690 = vmatpush1.bf16.msra.mxu0 0
        %1691 = vmatprep.subr.bf16.mxu0 0
        %1692 = vmatpush1.bf16.msra.mxu0 0
        %1693 = vmatprep.subr.bf16.mxu0 0
        %1694 = vmatpush1.bf16.msra.mxu0 0
        %1695 = vmatprep.subr.bf16.mxu0 0
        %1696 = vmatpush1.bf16.msra.mxu0 0
        %1697 = vmatprep.subr.bf16.mxu0 0
        %1698 = vmatpush1.bf16.msra.mxu0 0
        %1699 = vmatprep.subr.bf16.mxu0 0
        %1700 = vmatpush1.bf16.msra.mxu0 0
        %1701 = vmatprep.mubr.bf16.mxu0 0
        %1702 = vmatmul.mubr.bf16.gmra.mrb[0].mxu0 %v1664
        %v1703 = vpop.f32.mrb[0].mxu0
        %v1704 = vadd.f32 0.0, %v1703
        %v1705 = vpop.f32.mrb[0].mxu0
        %v1706 = vpop.f32.mrb[0].mxu0
        %v1707 = vpop.f32.mrb[0].mxu0
        %1708 = vdwg.mxu0
        %v1709 = vpack.c.bf16 %v1704, %v1704
        %v1711 = vunpack.c.l.b16 %v1709
        %v1712 = vpack.c.b16 %v1711, %v1711
        %1713 = vrot.lane.b32.xlu0 %v1712, 24
        %v1714 = vpop.permute.xlu0 %1713
        %vm1716 = vcmask 257216
        %1717 = vst.msk [vmem:[#allocation4] sm:$0xf] %vm1716, %v1714
        %v1718 = vld [vmem:[#allocation4] sm:$0xf]
        %v1719 = vld [vmem:[%s810] sm:$0xf]
        %v1720 = vld [vmem:[%s810 + $0x4] sm:$0xf]
        %v1721 = vld [vmem:[%s810 + $0x8] sm:$0xf]
        %v1722 = vld [vmem:[%s810 + $0xc] sm:$0xf]
        %v1723 = vld [vmem:[%s967] sm:$0x1]
        %v1725 = vlaneseq
        %v1726 = vshrl.u32 %v1725, 7
        %v1727 = vsub.s32 0, %v1726
        %v1728 = vrot.slane %v1723, %v1727
        %v1734 = vunpack.c.l.b16 %v1719
        %v1735 = vunpack.c.l.b16 %v1720
        %v1736 = vunpack.c.l.b16 %v1721
        %v1737 = vunpack.c.l.b16 %v1722
        %v1738 = vpack.c.b16 %v1735, %v1734
        %v1739 = vpack.c.b16 %v1737, %v1736
        %v1743 = vsel %vm1027, %v1718, 0
        %1745 = vmatprep.subr.bf16.mxu0 0
        %1746 = vmatpush1.bf16.msra.mxu0 %v1738
        %1747 = vmatprep.subr.bf16.mxu0 0
        %1748 = vmatpush1.bf16.msra.mxu0 %v1739
        %1749 = vmatprep.subr.bf16.mxu0 0
        %1750 = vmatpush1.bf16.msra.mxu0 0
        %1751 = vmatprep.subr.bf16.mxu0 0
        %1752 = vmatpush1.bf16.msra.mxu0 0
        %1753 = vmatprep.subr.bf16.mxu0 0
        %1754 = vmatpush1.bf16.msra.mxu0 0
        %1755 = vmatprep.subr.bf16.mxu0 0
        %1756 = vmatpush1.bf16.msra.mxu0 0
        %1757 = vmatprep.subr.bf16.mxu0 0
        %1758 = vmatpush1.bf16.msra.mxu0 0
        %1759 = vmatprep.subr.bf16.mxu0 0
        %1760 = vmatpush1.bf16.msra.mxu0 0
        %1761 = vmatprep.subr.bf16.mxu0 0
        %1762 = vmatpush1.bf16.msra.mxu0 0
        %1763 = vmatprep.subr.bf16.mxu0 0
        %1764 = vmatpush1.bf16.msra.mxu0 0
        %1765 = vmatprep.subr.bf16.mxu0 0
        %1766 = vmatpush1.bf16.msra.mxu0 0
        %1767 = vmatprep.subr.bf16.mxu0 0
        %1768 = vmatpush1.bf16.msra.mxu0 0
        %1769 = vmatprep.subr.bf16.mxu0 0
        %1770 = vmatpush1.bf16.msra.mxu0 0
        %1771 = vmatprep.subr.bf16.mxu0 0
        %1772 = vmatpush1.bf16.msra.mxu0 0
        %1773 = vmatprep.subr.bf16.mxu0 0
        %1774 = vmatpush1.bf16.msra.mxu0 0
        %1775 = vmatprep.subr.bf16.mxu0 0
        %1776 = vmatpush1.bf16.msra.mxu0 0
        %1777 = vmatprep.mubr.bf16.mxu0 0
        %1778 = vmatmul.mubr.bf16.gmra.mrb[0].mxu0 %v1743
        %v1779 = vpop.f32.mrb[0].mxu0
        %v1780 = vadd.f32 %v1728, %v1779
        %v1781 = vpop.f32.mrb[0].mxu0
        %v1782 = vpop.f32.mrb[0].mxu0
        %v1783 = vpop.f32.mrb[0].mxu0
        %1784 = vdwg.mxu0
        %v1785 = vadd.f32 %v999, %v1780
        %v1786 = vld [vmem:[%s970] sm:$0x1]
        %v1787 = vld [vmem:[%s973] sm:$0x1]
        %v1788 = vsel %vm1027, %v1785, 0.0
        %1789 = vadd.xlane.f32.xlu0 %v1788
        %v1790 = vpop.xlane.xlu0 %1789
        %v1791 = vrcp.pop 32.0
        %v1792 = vmul.f32 %v1790, %v1791
        %v1793 = vsub.f32 %v1785, %v1792
        %v1794 = vmul.f32 %v1793, %v1793
        %v1795 = vsel %vm1027, %v1794, 0.0
        %1796 = vadd.xlane.f32.xlu0 %v1795
        %v1797 = vpop.xlane.xlu0 %1796
        %v1798 = vmul.f32 %v1797, %v1791
        %v1799 = vadd.f32 %v1798, 1e-05
        %v1800 = vrsqrt.pop %v1799
        %v1801 = vmul.f32 %v1793, %v1800
        %v1803 = vlaneseq
        %v1804 = vshrl.u32 %v1803, 7
        %v1805 = vsub.s32 0, %v1804
        %v1806 = vrot.slane %v1786, %v1805
        %v1808 = vmul.f32 %v1801, %v1806
        %v1810 = vlaneseq
        %v1811 = vshrl.u32 %v1810, 7
        %v1812 = vsub.s32 0, %v1811
        %v1813 = vrot.slane %v1787, %v1812
        %v1815 = vadd.f32 %v1808, %v1813
        %v1816 = vpack.c.bf16 %v1815, %v1815
        %v1817 = vld [vmem:[%s819] sm:$0xf]
        %v1818 = vld [vmem:[%s819 + $0x4] sm:$0xf]
        %v1819 = vld [vmem:[%s819 + $0x8] sm:$0xf]
        %v1820 = vld [vmem:[%s819 + $0xc] sm:$0xf]
        %v1821 = vld [vmem:[%s982] sm:$0x1]
        %v1823 = vlaneseq
        %v1824 = vshrl.u32 %v1823, 7
        %v1825 = vsub.s32 0, %v1824
        %v1826 = vrot.slane %v1821, %v1825
        %v1832 = vunpack.c.l.b16 %v1817
        %v1833 = vunpack.c.l.b16 %v1818
        %v1834 = vunpack.c.l.b16 %v1819
        %v1835 = vunpack.c.l.b16 %v1820
        %v1836 = vpack.c.b16 %v1833, %v1832
        %v1837 = vpack.c.b16 %v1835, %v1834
        %v1841 = vsel %vm1027, %v1816, 0
        %1843 = vmatprep.subr.bf16.mxu0 0
        %1844 = vmatpush1.bf16.msra.mxu0 %v1836
        %1845 = vmatprep.subr.bf16.mxu0 0
        %1846 = vmatpush1.bf16.msra.mxu0 %v1837
        %1847 = vmatprep.subr.bf16.mxu0 0
        %1848 = vmatpush1.bf16.msra.mxu0 0
        %1849 = vmatprep.subr.bf16.mxu0 0
        %1850 = vmatpush1.bf16.msra.mxu0 0
        %1851 = vmatprep.subr.bf16.mxu0 0
        %1852 = vmatpush1.bf16.msra.mxu0 0
        %1853 = vmatprep.subr.bf16.mxu0 0
        %1854 = vmatpush1.bf16.msra.mxu0 0
        %1855 = vmatprep.subr.bf16.mxu0 0
        %1856 = vmatpush1.bf16.msra.mxu0 0
        %1857 = vmatprep.subr.bf16.mxu0 0
        %1858 = vmatpush1.bf16.msra.mxu0 0
        %1859 = vmatprep.subr.bf16.mxu0 0
        %1860 = vmatpush1.bf16.msra.mxu0 0
        %1861 = vmatprep.subr.bf16.mxu0 0
        %1862 = vmatpush1.bf16.msra.mxu0 0
        %1863 = vmatprep.subr.bf16.mxu0 0
        %1864 = vmatpush1.bf16.msra.mxu0 0
        %1865 = vmatprep.subr.bf16.mxu0 0
        %1866 = vmatpush1.bf16.msra.mxu0 0
        %1867 = vmatprep.subr.bf16.mxu0 0
        %1868 = vmatpush1.bf16.msra.mxu0 0
        %1869 = vmatprep.subr.bf16.mxu0 0
        %1870 = vmatpush1.bf16.msra.mxu0 0
        %1871 = vmatprep.subr.bf16.mxu0 0
        %1872 = vmatpush1.bf16.msra.mxu0 0
        %1873 = vmatprep.subr.bf16.mxu0 0
        %1874 = vmatpush1.bf16.msra.mxu0 0
        %1875 = vmatprep.mubr.bf16.mxu0 0
        %1876 = vmatmul.mubr.bf16.gmra.mrb[0].mxu0 %v1841
        %v1877 = vpop.f32.mrb[0].mxu0
        %v1878 = vadd.f32 %v1826, %v1877
        %v1879 = vpop.f32.mrb[0].mxu0
        %v1880 = vpop.f32.mrb[0].mxu0
        %v1881 = vpop.f32.mrb[0].mxu0
        %1882 = vdwg.mxu0
        %v1883 = vmax.f32 %v1878, 0.0
        %v1884 = vpack.c.bf16 %v1883, %v1883
        %v1885 = vld [vmem:[%s987] sm:$0xf]
        %v1886 = vld [vmem:[%s987 + $0x4] sm:$0xf]
        %v1887 = vld [vmem:[%s987 + $0x8] sm:$0xf]
        %v1888 = vld [vmem:[%s987 + $0xc] sm:$0xf]
        %v1889 = vld [vmem:[%s987 + $0x10] sm:$0xf]
        %v1890 = vld [vmem:[%s987 + $0x14] sm:$0xf]
        %v1891 = vld [vmem:[%s987 + $0x18] sm:$0xf]
        %v1892 = vld [vmem:[%s987 + $0x1c] sm:$0xf]
        %v1893 = vld [vmem:[%s990] sm:$0x1]
        %v1895 = vlaneseq
        %v1896 = vshrl.u32 %v1895, 7
        %v1897 = vsub.s32 0, %v1896
        %v1898 = vrot.slane %v1893, %v1897
        %v1908 = vunpack.c.l.b16 %v1885
        %v1909 = vunpack.c.l.b16 %v1886
        %v1910 = vunpack.c.l.b16 %v1887
        %v1911 = vunpack.c.l.b16 %v1888
        %v1912 = vunpack.c.l.b16 %v1889
        %v1913 = vunpack.c.l.b16 %v1890
        %v1914 = vunpack.c.l.b16 %v1891
        %v1915 = vunpack.c.l.b16 %v1892
        %v1916 = vpack.c.b16 %v1909, %v1908
        %v1917 = vpack.c.b16 %v1911, %v1910
        %v1918 = vpack.c.b16 %v1913, %v1912
        %v1919 = vpack.c.b16 %v1915, %v1914
        %vm1924 = vcmask 523264
        %v1926 = vsel %vm1924, %v1884, 0
        %1928 = vmatprep.subr.bf16.mxu0 0
        %1929 = vmatpush1.bf16.msra.mxu0 %v1916
        %1930 = vmatprep.subr.bf16.mxu0 0
        %1931 = vmatpush1.bf16.msra.mxu0 %v1917
        %1932 = vmatprep.subr.bf16.mxu0 0
        %1933 = vmatpush1.bf16.msra.mxu0 %v1918
        %1934 = vmatprep.subr.bf16.mxu0 0
        %1935 = vmatpush1.bf16.msra.mxu0 %v1919
        %1936 = vmatprep.subr.bf16.mxu0 0
        %1937 = vmatpush1.bf16.msra.mxu0 0
        %1938 = vmatprep.subr.bf16.mxu0 0
        %1939 = vmatpush1.bf16.msra.mxu0 0
        %1940 = vmatprep.subr.bf16.mxu0 0
        %1941 = vmatpush1.bf16.msra.mxu0 0
        %1942 = vmatprep.subr.bf16.mxu0 0
        %1943 = vmatpush1.bf16.msra.mxu0 0
        %1944 = vmatprep.subr.bf16.mxu0 0
        %1945 = vmatpush1.bf16.msra.mxu0 0
        %1946 = vmatprep.subr.bf16.mxu0 0
        %1947 = vmatpush1.bf16.msra.mxu0 0
        %1948 = vmatprep.subr.bf16.mxu0 0
        %1949 = vmatpush1.bf16.msra.mxu0 0
        %1950 = vmatprep.subr.bf16.mxu0 0
        %1951 = vmatpush1.bf16.msra.mxu0 0
        %1952 = vmatprep.subr.bf16.mxu0 0
        %1953 = vmatpush1.bf16.msra.mxu0 0
        %1954 = vmatprep.subr.bf16.mxu0 0
        %1955 = vmatpush1.bf16.msra.mxu0 0
        %1956 = vmatprep.subr.bf16.mxu0 0
        %1957 = vmatpush1.bf16.msra.mxu0 0
        %1958 = vmatprep.subr.bf16.mxu0 0
        %1959 = vmatpush1.bf16.msra.mxu0 0
        %1960 = vmatprep.mubr.bf16.mxu0 0
        %1961 = vmatmul.mubr.bf16.gmra.mrb[0].mxu0 %v1926
        %v1962 = vpop.f32.mrb[0].mxu0
        %v1963 = vadd.f32 %v1898, %v1962
        %v1964 = vpop.f32.mrb[0].mxu0
        %v1965 = vpop.f32.mrb[0].mxu0
        %v1966 = vpop.f32.mrb[0].mxu0
        %1967 = vdwg.mxu0
        %v1968 = vadd.f32 %v1815, %v1963
        %v1969 = vld [vmem:[%s976] sm:$0x1]
        %v1970 = vld [vmem:[%s979] sm:$0x1]
        %v1971 = vsel %vm1027, %v1968, 0.0
        %1972 = vadd.xlane.f32.xlu0 %v1971
        %v1973 = vpop.xlane.xlu0 %1972
        %v1974 = vmul.f32 %v1973, %v1791
        %v1975 = vsub.f32 %v1968, %v1974
        %v1976 = vmul.f32 %v1975, %v1975
        %v1977 = vsel %vm1027, %v1976, 0.0
        %1978 = vadd.xlane.f32.xlu0 %v1977
        %v1979 = vpop.xlane.xlu0 %1978
        %v1980 = vmul.f32 %v1979, %v1791
        %v1981 = vadd.f32 %v1980, 1e-05
        %v1982 = vrsqrt.pop %v1981
        %v1983 = vmul.f32 %v1975, %v1982
        %v1985 = vlaneseq
        %v1986 = vshrl.u32 %v1985, 7
        %v1987 = vsub.s32 0, %v1986
        %v1988 = vrot.slane %v1969, %v1987
        %v1990 = vmul.f32 %v1983, %v1988
        %v1992 = vlaneseq
        %v1993 = vshrl.u32 %v1992, 7
        %v1994 = vsub.s32 0, %v1993
        %v1995 = vrot.slane %v1970, %v1994
        %v1997 = vadd.f32 %v1990, %v1995
        %1998 = vst.msk [vmem:[#allocation2] sm:$0xff] %vm1027, %v1997
        %p1999 = scmp.eq.s32.totalorder %s48, 1
        // Predicated region
        $region121: #{tpu_custom_call.1} parent=99 // pred_check
          %p2000 = pneg %p1999
        $region122: #{tpu_custom_call.1} parent=99 // pred_check_branch
          %2002 = sbr.rel (%p2000) target = $region124
        $region123: #{tpu_custom_call.1} parent=99 // pred_region
          %v2003 = vld [vmem:[%s18] sm:$0x1]
          %v2004 = vld [vmem:[%s19] sm:$0x1]
          %v2005 = vsel %vm1027, %v1997, 0.0
          %2006 = vadd.xlane.f32.xlu0 %v2005
          %v2007 = vpop.xlane.xlu0 %2006
          %v2008 = vmul.f32 %v2007, %v1791
          %v2009 = vsub.f32 %v1997, %v2008
          %v2010 = vmul.f32 %v2009, %v2009
          %v2011 = vsel %vm1027, %v2010, 0.0
          %2012 = vadd.xlane.f32.xlu0 %v2011
          %v2013 = vpop.xlane.xlu0 %2012
          %v2014 = vmul.f32 %v2013, %v1791
          %v2015 = vadd.f32 %v2014, 1e-05
          %v2016 = vrsqrt.pop %v2015
          %v2017 = vmul.f32 %v2009, %v2016
          %v2019 = vlaneseq
          %v2020 = vshrl.u32 %v2019, 7
          %v2021 = vsub.s32 0, %v2020
          %v2022 = vrot.slane %v2003, %v2021
          %v2024 = vmul.f32 %v2017, %v2022
          %v2026 = vlaneseq
          %v2027 = vshrl.u32 %v2026, 7
          %v2028 = vsub.s32 0, %v2027
          %v2029 = vrot.slane %v2004, %v2028
          %v2031 = vadd.f32 %v2024, %v2029
          %2032 = vst.msk [vmem:[%s940] sm:$0xff] %vm1027, %v2031
        $region124: #{tpu_custom_call.1} parent=99 // pred_fallthru
          _
        %s2033 = sand.u32 %s573, 1
        %s2034 = scalar_lea.sflag [#allocation7], %s2033
        %s2035 = sand.u32 %s573, 1
        %s2036 = smul.addr %s2035, 8
        %s2037 = scalar_lea.vmem [#allocation13], %s2036
        // Predicated region
        $region125: #{tpu_custom_call.1} parent=99 // pred_check
          %p2038 = pneg %p583
        $region126: #{tpu_custom_call.1} parent=99 // pred_check_branch
          %2040 = sbr.rel (%p2038) target = $region128
        $region127: #{tpu_custom_call.1} parent=99 // pred_region
          %s2042 = ssub.s32 128, 128
          %2043 = vsyncadd %s2034, %s2042
          %s2044 = smul.addr %s47, 128
          %s2045 = scalar_lea.hbm %s20, %s2044
          %s2047 = sshll.u32 %s2037, 4
          %s2048 = int_to_ptr.vmem [resolvable:$true] %s2047
          %2050 = dma.vmem_to_hbm [thread:$0]  %s2048, 128, %s2045, %s2034
        $region128: #{tpu_custom_call.1} parent=99 // pred_fallthru
          _
      $region100: #{tpu_custom_call.1} parent=5 // pred_fallthru
        _
      %p2051 = scmp.le.s32.totalorder 2, %s38
      // Predicated region
      $region129: #{tpu_custom_call.1} parent=5 // pred_check
        %p2052 = pneg %p2051
      $region130: #{tpu_custom_call.1} parent=5 // pred_check_branch
        %2054 = sbr.rel (%p2052) target = $region132
      $region131: #{tpu_custom_call.1} parent=5 // pred_region
        %s2055 = ssub.s32 %s38, 2
        // Predicated region
        $region133: #{tpu_custom_call.1} parent=131 // pred_check
          %p2056 = pneg %p589
        $region134: #{tpu_custom_call.1} parent=131 // pred_check_branch
          %2058 = sbr.rel (%p2056) target = $region136
        $region135: #{tpu_custom_call.1} parent=131 // pred_region
          %s2059 = sand.u32 %s574, 1
          %s2060 = scalar_lea.sflag [#allocation7], %s2059
          %s2061 = sand.u32 %s574, 1
          %s2062 = smul.addr %s2061, 8
          %s2063 = scalar_lea.vmem [#allocation13], %s2062
          %2064 = dma.done %s2060, 128
        $region136: #{tpu_custom_call.1} parent=131 // pred_fallthru
          _
      $region132: #{tpu_custom_call.1} parent=5 // pred_fallthru
        _
    $region6: #{tpu_custom_call.1} parent=1 // loop_footer
      %s42 = sadd.s32 1, %s38
    $region7: #{tpu_custom_call.1} parent=1 // loop_footer_branch
      %37 = sbr.rel target = $region3
    $region8: #{tpu_custom_call.1} parent=1 // loop_exit
      _
    %2065 = vsyncpa [#allocation6], 1
    %s2066 = scalar_lea.sflag [#allocation6], 1
    %2067 = vsyncpa %s2066, 1
    %2068 = vsyncpa [#allocation9], 1
    %s2069 = scalar_lea.sflag [#allocation9], 1
    %2070 = vsyncpa %s2069, 1
    %2071 = vsyncpa [#allocation12], 1
    %s2072 = scalar_lea.sflag [#allocation12], 1
    %2073 = vsyncpa %s2072, 1
    %2074 = vsyncpa [#allocation7], 1
    %s2075 = scalar_lea.sflag [#allocation7], 1
    %2076 = vsyncpa %s2075, 1

</llo_original>
